<compile_context>
chip_gen: v6e
topology: v6e:2x2x1
jax: 0.10.0
libtpu: 0.0.40
codegen_flags: <defaults>
</compile_context>

<pallas_src>
import functools
from math import floor

import numpy as np
import jax
import jax.numpy as jnp
from jax.experimental import pallas as pl
from jax.experimental.pallas import tpu as pltpu

# ---------------------------------------------------------------------------
# Module configuration (mirrors ConvDecoder.__init__ arguments)
# ---------------------------------------------------------------------------
CONV_KERNEL_SIZES = [3, 3]
CHANNELS = [8, 8]
POOL_KERNEL_SIZES = [2, 2]
OUTPUT_SIZE = 16
CONV_STRIDES = [1, 1]
POOL_STRIDES = [2, 2]
OUTPUT_CHANNELS = 4
BN_EPS = 1e-5
BATCH = 2

LANES = 128  # every flattened (channel*length) slab is zero-padded to this lane width


def _compute_sizes():
    """Replicates the `sizes` computation in ConvDecoder.__init__."""
    sizes = [OUTPUT_SIZE]
    cur = OUTPUT_SIZE
    for ck, cs, pk, ps in zip(
        reversed(CONV_KERNEL_SIZES),
        reversed(CONV_STRIDES),
        reversed(POOL_KERNEL_SIZES),
        reversed(POOL_STRIDES),
    ):
        cpad = (ck - 1) // 2
        cur = floor((cur + 2 * cpad - ck) / cs + 1)
        cur = floor((cur - pk) / ps + 1)
        sizes.append(cur)
    sizes.reverse()
    return sizes


def _build_stage_cfgs():
    sizes = _compute_sizes()
    cfgs = []
    n = len(CONV_KERNEL_SIZES)
    for i in range(n):
        prev_ch = CHANNELS[i]
        new_ch = OUTPUT_CHANNELS if i == n - 1 else CHANNELS[i + 1]
        prev_size, new_size = sizes[i], sizes[i + 1]
        convt_size = (prev_size - 1) * POOL_STRIDES[i] + POOL_KERNEL_SIZES[i]
        out_pad = new_size - convt_size
        assert out_pad >= 0, "negative output_padding is not supported"
        l_mid = convt_size + out_pad
        conv_pad = (CONV_KERNEL_SIZES[i] - 1) // 2
        l_out = (l_mid + 2 * conv_pad - CONV_KERNEL_SIZES[i]) // CONV_STRIDES[i] + 1
        cfg = dict(
            prev_ch=prev_ch, new_ch=new_ch,
            pool_k=POOL_KERNEL_SIZES[i], pool_stride=POOL_STRIDES[i], out_pad=out_pad,
            conv_k=CONV_KERNEL_SIZES[i], conv_stride=CONV_STRIDES[i], conv_pad=conv_pad,
            l_in=prev_size, l_mid=l_mid, l_out=l_out,
        )
        assert prev_ch * prev_size <= LANES
        assert prev_ch * l_mid <= LANES
        assert new_ch * l_out <= LANES
        cfgs.append(cfg)
    return sizes, cfgs


# ---------------------------------------------------------------------------
# Host-side packing: fold conv weights into block-Toeplitz matrices and pack
# all parameters into one matrix slab and one vector slab (zero-padded).
# ---------------------------------------------------------------------------
def _build_packed_operands(params, stage_cfgs, batch):
    mats, vecs = [], []
    for i, cfg in enumerate(stage_cfgs):
        ga, ba, wt, bt, gb, bb, wc, bc = (
            np.asarray(p, np.float32) for p in params[8 * i: 8 * i + 8]
        )
        C, Cn = cfg["prev_ch"], cfg["new_ch"]
        Li, Lm, Lo = cfg["l_in"], cfg["l_mid"], cfg["l_out"]
        kt, st = cfg["pool_k"], cfg["pool_stride"]
        kc, sc, pc = cfg["conv_k"], cfg["conv_stride"], cfg["conv_pad"]

        # Block-diagonal averaging matrices: rowsum(x) @ avg == per-channel batch mean,
        # already broadcast back to the flattened (C*L) layout.
        avg_a = np.zeros((LANES, LANES), np.float32)
        avg_b = np.zeros((LANES, LANES), np.float32)
        for c in range(C):
            avg_a[c * Li:(c + 1) * Li, c * Li:(c + 1) * Li] = 1.0 / (batch * Li)
            avg_b[c * Lm:(c + 1) * Lm, c * Lm:(c + 1) * Lm] = 1.0 / (batch * Lm)

        # ConvTranspose1d (PyTorch weight layout (Cin, Cout, k)) as block-Toeplitz:
        #   y[o*Lm + t*st + j] += x[c*Li + t] * wt[c, o, j]
        Mt = np.zeros((LANES, LANES), np.float32)
        for c in range(C):
            for o in range(C):
                for t in range(Li):
                    for j in range(kt):
                        Mt[c * Li + t, o * Lm + t * st + j] += wt[c, o, j]

        # Conv1d (PyTorch weight layout (Cout, Cin, k)) as block-Toeplitz:
        #   y[o*Lo + l] += x[c*Lm + l*sc + j - pc] * wc[o, c, j]
        Mc = np.zeros((LANES, LANES), np.float32)
        for o in range(Cn):
            for c in range(C):
                for l in range(Lo):
                    for j in range(kc):
                        t = l * sc + j - pc
                        if 0 <= t < Lm:
                            Mc[c * Lm + t, o * Lo + l] += wc[o, c, j]

        def bcast(v, L):  # per-channel vector -> flattened (C*L), zero-padded to LANES
            out = np.zeros((LANES,), np.float32)
            out[: v.shape[0] * L] = np.repeat(v, L)
            return out

        mats += [avg_a, Mt, avg_b, Mc]
        vecs += [bcast(ga, Li), bcast(ba, Li), bcast(bt, Lm),
                 bcast(gb, Lm), bcast(bb, Lm), bcast(bc, Lo)]

    return jnp.asarray(np.stack(mats)), jnp.asarray(np.stack(vecs))


# ---------------------------------------------------------------------------
# Pallas kernel: whole ConvDecoder forward, fused, single invocation
# ---------------------------------------------------------------------------
def _bn_fused(h, avg, gamma, beta):
    """Training-mode BatchNorm1d on the flattened (N, C*L) slab as one scale/shift pass."""
    mean = jnp.dot(jnp.sum(h, axis=0, keepdims=True), avg,
                   preferred_element_type=jnp.float32)
    mean_sq = jnp.dot(jnp.sum(h * h, axis=0, keepdims=True), avg,
                      preferred_element_type=jnp.float32)
    var = mean_sq - mean * mean                      # biased batch variance
    scale = gamma * jax.lax.rsqrt(var + BN_EPS)      # zero in padded lanes (gamma == 0)
    return h * scale + (beta - mean * scale)


def _decoder_kernel(n_stages, x_ref, mats_ref, vecs_ref, out_ref):
    h = x_ref[...]                                   # (N, 128) f32, padded lanes are zero
    for i in range(n_stages):
        m, v = 4 * i, 6 * i
        h = jnp.maximum(h, 0.0)                                        # ReLU
        h = _bn_fused(h, mats_ref[m + 0],
                      vecs_ref[v + 0:v + 1, :], vecs_ref[v + 1:v + 2, :])  # BatchNorm1d
        # TODO(synk): Dropout(p=0.0) is an identity; non-zero dropout is not implemented.
        h = jnp.dot(h, mats_ref[m + 1],                                # ConvTranspose1d
                    preferred_element_type=jnp.float32) + vecs_ref[v + 2:v + 3, :]
        h = jnp.maximum(h, 0.0)                                        # ReLU
        h = _bn_fused(h, mats_ref[m + 2],
                      vecs_ref[v + 3:v + 4, :], vecs_ref[v + 4:v + 5, :])  # BatchNorm1d
        h = jnp.dot(h, mats_ref[m + 3],                                # Conv1d
                    preferred_element_type=jnp.float32) + vecs_ref[v + 5:v + 6, :]
    out_ref[...] = h


def conv_decoder_forward(x, mats, vecs, stage_cfgs):
    n = x.shape[0]
    c0, l0 = stage_cfgs[0]["prev_ch"], stage_cfgs[0]["l_in"]
    cn, ln = stage_cfgs[-1]["new_ch"], stage_cfgs[-1]["l_out"]

    # Lane-dense flattened input slab, zero-padded to 128 lanes.
    x2d = jnp.zeros((n, LANES), jnp.float32).at[:, : c0 * l0].set(
        x.reshape(n, c0 * l0).astype(jnp.float32))

    out2d = pl.pallas_call(
        functools.partial(_decoder_kernel, len(stage_cfgs)),
        out_shape=jax.ShapeDtypeStruct((n, LANES), jnp.float32),
        in_specs=[pl.BlockSpec(memory_space=pltpu.MemorySpace.VMEM)] * 3,
        out_specs=pl.BlockSpec(memory_space=pltpu.MemorySpace.VMEM),
    )(x2d, mats, vecs)

    return out2d[:, : cn * ln].reshape(n, cn, ln)


# ---------------------------------------------------------------------------
# Pure-JAX reference (lax.conv_general_dilated) for correctness checking
# ---------------------------------------------------------------------------
def _batchnorm_train_ref(h, gamma, beta):
    mean = jnp.mean(h, axis=(0, 2), keepdims=True)
    var = jnp.mean((h - mean) ** 2, axis=(0, 2), keepdims=True)
    g = gamma.reshape(1, -1, 1)
    b = beta.reshape(1, -1, 1)
    return g * (h - mean) * jax.lax.rsqrt(var + BN_EPS) + b


def _reference_forward(x, params, stage_cfgs):
    h = x
    for i, cfg in enumerate(stage_cfgs):
        ga, ba, wt, bt, gb, bb, wc, bc = params[8 * i: 8 * i + 8]
        h = jnp.maximum(h, 0.0)
        h = _batchnorm_train_ref(h, ga, ba)
        s, k, op = cfg["pool_stride"], cfg["pool_k"], cfg["out_pad"]
        rhs = jnp.flip(wt, axis=2).transpose(1, 0, 2)          # (Cout, Cin, k)
        h = jax.lax.conv_general_dilated(
            h, rhs, window_strides=(1,), padding=[(k - 1, k - 1 + op)],
            lhs_dilation=(s,), dimension_numbers=("NCH", "OIH", "NCH"),
        ) + bt.reshape(1, -1, 1)
        h = jnp.maximum(h, 0.0)
        h = _batchnorm_train_ref(h, gb, bb)
        cs, ck, cp = cfg["conv_stride"], cfg["conv_k"], cfg["conv_pad"]
        h = jax.lax.conv_general_dilated(
            h, wc, window_strides=(cs,), padding=[(cp, cp)],
            dimension_numbers=("NCH", "OIH", "NCH"),
        ) + bc.reshape(1, -1, 1)
    return h


# ---------------------------------------------------------------------------
# Deterministic parameter construction (PyTorch layouts) + driver
# ---------------------------------------------------------------------------
def _init_params(key, stage_cfgs):
    params = []
    for cfg in stage_cfgs:
        C, Cn = cfg["prev_ch"], cfg["new_ch"]
        pk, ck = cfg["pool_k"], cfg["conv_k"]
        key, *sub = jax.random.split(key, 9)
        ga = 1.0 + 0.1 * jax.random.normal(sub[0], (C,))
        ba = 0.1 * jax.random.normal(sub[1], (C,))
        wt = jax.random.normal(sub[2], (C, C, pk)) / (C * pk) ** 0.5   # ConvTranspose1d (Cin,Cout,k)
        bt = 0.1 * jax.random.normal(sub[3], (C,))
        gb = 1.0 + 0.1 * jax.random.normal(sub[4], (C,))
        bb = 0.1 * jax.random.normal(sub[5], (C,))
        wc = jax.random.normal(sub[6], (Cn, C, ck)) / (C * ck) ** 0.5  # Conv1d (Cout,Cin,k)
        bc = 0.1 * jax.random.normal(sub[7], (Cn,))
        params += [p.astype(jnp.float32) for p in (ga, ba, wt, bt, gb, bb, wc, bc)]
    return key, params


if __name__ == "__main__":
    sizes, stage_cfgs = _build_stage_cfgs()          # sizes == [4, 8, 16]
    key = jax.random.PRNGKey(0)
    key, params = _init_params(key, stage_cfgs)
    key, xk = jax.random.split(key)
    x = jax.random.normal(xk, (BATCH, CHANNELS[0], sizes[0]), dtype=jnp.float32)

    mats, vecs = _build_packed_operands(params, stage_cfgs, BATCH)
    y = conv_decoder_forward(x, mats, vecs, stage_cfgs)
    y = jax.block_until_ready(y)

    assert y.shape == (BATCH, OUTPUT_CHANNELS, OUTPUT_SIZE), y.shape
    y_ref = _reference_forward(x, params, stage_cfgs)
    err = float(jnp.max(jnp.abs(y - y_ref)))
    assert err < 1e-3, f"max abs error {err}"
    print("KERNEL_OK")
</pallas_src>

<mosaic_0001>
module attributes {stable_mosaic.version = 11 : i64} {
  func.func @_decoder_kernel(%arg0: memref<2x128xf32, #tpu.memory_space<vmem>>, %arg1: memref<8x128x128xf32, #tpu.memory_space<vmem>>, %arg2: memref<12x128xf32, #tpu.memory_space<vmem>>, %arg3: memref<2x128xf32, #tpu.memory_space<vmem>>) attributes {dimension_semantics = [], scalar_prefetch = 0 : i64, scratch_operands = 0 : i64, tpu.core_type = #tpu.core_type<tc>} {
    %c0 = arith.constant 0 : index
    %c0_0 = arith.constant 0 : index
    %0 = vector.load %arg0[%c0, %c0_0] : memref<2x128xf32, #tpu.memory_space<vmem>>, vector<2x128xf32>
    %cst = arith.constant 0.000000e+00 : f32
    %1 = vector.broadcast %cst : f32 to vector<2x128xf32>
    %2 = arith.maximumf %0, %1 : vector<2x128xf32>
    %c0_1 = arith.constant 0 : index
    %c0_2 = arith.constant 0 : index
    %c0_3 = arith.constant 0 : index
    %3 = vector.load %arg1[%c0_1, %c0_2, %c0_3] : memref<8x128x128xf32, #tpu.memory_space<vmem>>, vector<1x128x128xf32>
    %4 = vector.shape_cast %3 : vector<1x128x128xf32> to vector<128x128xf32>
    %c0_4 = arith.constant 0 : index
    %c0_5 = arith.constant 0 : index
    %5 = vector.load %arg2[%c0_4, %c0_5] : memref<12x128xf32, #tpu.memory_space<vmem>>, vector<1x128xf32>
    %c1 = arith.constant 1 : index
    %c0_6 = arith.constant 0 : index
    %6 = vector.load %arg2[%c1, %c0_6] : memref<12x128xf32, #tpu.memory_space<vmem>>, vector<1x128xf32>
    %cst_7 = arith.constant dense<0.000000e+00> : vector<128xf32>
    %7 = vector.multi_reduction <add>, %2, %cst_7 [0] : vector<2x128xf32> to vector<128xf32>
    %8 = vector.shape_cast %7 : vector<128xf32> to vector<1x128xf32>
    %cst_8 = arith.constant dense<0.000000e+00> : vector<1x128xf32>
    %9 = tpu.matmul %8, %4, %cst_8 {dimension_numbers = #tpu.dot_dimension_numbers<[1], [0], [0], [1], [0, 0, 1, 1], [], []>} : vector<1x128xf32>, vector<128x128xf32>, vector<1x128xf32> -> vector<1x128xf32>
    %10 = arith.mulf %2, %2 : vector<2x128xf32>
    %cst_9 = arith.constant dense<0.000000e+00> : vector<128xf32>
    %11 = vector.multi_reduction <add>, %10, %cst_9 [0] : vector<2x128xf32> to vector<128xf32>
    %12 = vector.shape_cast %11 : vector<128xf32> to vector<1x128xf32>
    %cst_10 = arith.constant dense<0.000000e+00> : vector<1x128xf32>
    %13 = tpu.matmul %12, %4, %cst_10 {dimension_numbers = #tpu.dot_dimension_numbers<[1], [0], [0], [1], [0, 0, 1, 1], [], []>} : vector<1x128xf32>, vector<128x128xf32>, vector<1x128xf32> -> vector<1x128xf32>
    %14 = arith.mulf %9, %9 : vector<1x128xf32>
    %15 = arith.subf %13, %14 : vector<1x128xf32>
    %cst_11 = arith.constant 9.99999974E-6 : f32
    %16 = vector.broadcast %cst_11 : f32 to vector<1x128xf32>
    %17 = arith.addf %15, %16 : vector<1x128xf32>
    %18 = math.rsqrt %17 : vector<1x128xf32>
    %19 = arith.mulf %5, %18 : vector<1x128xf32>
    %20 = vector.broadcast %19 : vector<1x128xf32> to vector<2x128xf32>
    %21 = arith.mulf %2, %20 : vector<2x128xf32>
    %22 = arith.mulf %9, %19 : vector<1x128xf32>
    %23 = arith.subf %6, %22 : vector<1x128xf32>
    %24 = vector.broadcast %23 : vector<1x128xf32> to vector<2x128xf32>
    %25 = arith.addf %21, %24 : vector<2x128xf32>
    %c1_12 = arith.constant 1 : index
    %c0_13 = arith.constant 0 : index
    %c0_14 = arith.constant 0 : index
    %26 = vector.load %arg1[%c1_12, %c0_13, %c0_14] : memref<8x128x128xf32, #tpu.memory_space<vmem>>, vector<1x128x128xf32>
    %27 = vector.shape_cast %26 : vector<1x128x128xf32> to vector<128x128xf32>
    %cst_15 = arith.constant dense<0.000000e+00> : vector<2x128xf32>
    %28 = tpu.matmul %25, %27, %cst_15 {dimension_numbers = #tpu.dot_dimension_numbers<[1], [0], [0], [1], [0, 0, 1, 1], [], []>} : vector<2x128xf32>, vector<128x128xf32>, vector<2x128xf32> -> vector<2x128xf32>
    %c2 = arith.constant 2 : index
    %c0_16 = arith.constant 0 : index
    %29 = vector.load %arg2[%c2, %c0_16] : memref<12x128xf32, #tpu.memory_space<vmem>>, vector<1x128xf32>
    %30 = vector.broadcast %29 : vector<1x128xf32> to vector<2x128xf32>
    %31 = arith.addf %28, %30 : vector<2x128xf32>
    %cst_17 = arith.constant 0.000000e+00 : f32
    %32 = vector.broadcast %cst_17 : f32 to vector<2x128xf32>
    %33 = arith.maximumf %31, %32 : vector<2x128xf32>
    %c2_18 = arith.constant 2 : index
    %c0_19 = arith.constant 0 : index
    %c0_20 = arith.constant 0 : index
    %34 = vector.load %arg1[%c2_18, %c0_19, %c0_20] : memref<8x128x128xf32, #tpu.memory_space<vmem>>, vector<1x128x128xf32>
    %35 = vector.shape_cast %34 : vector<1x128x128xf32> to vector<128x128xf32>
    %c3 = arith.constant 3 : index
    %c0_21 = arith.constant 0 : index
    %36 = vector.load %arg2[%c3, %c0_21] : memref<12x128xf32, #tpu.memory_space<vmem>>, vector<1x128xf32>
    %c4 = arith.constant 4 : index
    %c0_22 = arith.constant 0 : index
    %37 = vector.load %arg2[%c4, %c0_22] : memref<12x128xf32, #tpu.memory_space<vmem>>, vector<1x128xf32>
    %cst_23 = arith.constant dense<0.000000e+00> : vector<128xf32>
    %38 = vector.multi_reduction <add>, %33, %cst_23 [0] : vector<2x128xf32> to vector<128xf32>
    %39 = vector.shape_cast %38 : vector<128xf32> to vector<1x128xf32>
    %cst_24 = arith.constant dense<0.000000e+00> : vector<1x128xf32>
    %40 = tpu.matmul %39, %35, %cst_24 {dimension_numbers = #tpu.dot_dimension_numbers<[1], [0], [0], [1], [0, 0, 1, 1], [], []>} : vector<1x128xf32>, vector<128x128xf32>, vector<1x128xf32> -> vector<1x128xf32>
    %41 = arith.mulf %33, %33 : vector<2x128xf32>
    %cst_25 = arith.constant dense<0.000000e+00> : vector<128xf32>
    %42 = vector.multi_reduction <add>, %41, %cst_25 [0] : vector<2x128xf32> to vector<128xf32>
    %43 = vector.shape_cast %42 : vector<128xf32> to vector<1x128xf32>
    %cst_26 = arith.constant dense<0.000000e+00> : vector<1x128xf32>
    %44 = tpu.matmul %43, %35, %cst_26 {dimension_numbers = #tpu.dot_dimension_numbers<[1], [0], [0], [1], [0, 0, 1, 1], [], []>} : vector<1x128xf32>, vector<128x128xf32>, vector<1x128xf32> -> vector<1x128xf32>
    %45 = arith.mulf %40, %40 : vector<1x128xf32>
    %46 = arith.subf %44, %45 : vector<1x128xf32>
    %cst_27 = arith.constant 9.99999974E-6 : f32
    %47 = vector.broadcast %cst_27 : f32 to vector<1x128xf32>
    %48 = arith.addf %46, %47 : vector<1x128xf32>
    %49 = math.rsqrt %48 : vector<1x128xf32>
    %50 = arith.mulf %36, %49 : vector<1x128xf32>
    %51 = vector.broadcast %50 : vector<1x128xf32> to vector<2x128xf32>
    %52 = arith.mulf %33, %51 : vector<2x128xf32>
    %53 = arith.mulf %40, %50 : vector<1x128xf32>
    %54 = arith.subf %37, %53 : vector<1x128xf32>
    %55 = vector.broadcast %54 : vector<1x128xf32> to vector<2x128xf32>
    %56 = arith.addf %52, %55 : vector<2x128xf32>
    %c3_28 = arith.constant 3 : index
    %c0_29 = arith.constant 0 : index
    %c0_30 = arith.constant 0 : index
    %57 = vector.load %arg1[%c3_28, %c0_29, %c0_30] : memref<8x128x128xf32, #tpu.memory_space<vmem>>, vector<1x128x128xf32>
    %58 = vector.shape_cast %57 : vector<1x128x128xf32> to vector<128x128xf32>
    %cst_31 = arith.constant dense<0.000000e+00> : vector<2x128xf32>
    %59 = tpu.matmul %56, %58, %cst_31 {dimension_numbers = #tpu.dot_dimension_numbers<[1], [0], [0], [1], [0, 0, 1, 1], [], []>} : vector<2x128xf32>, vector<128x128xf32>, vector<2x128xf32> -> vector<2x128xf32>
    %c5 = arith.constant 5 : index
    %c0_32 = arith.constant 0 : index
    %60 = vector.load %arg2[%c5, %c0_32] : memref<12x128xf32, #tpu.memory_space<vmem>>, vector<1x128xf32>
    %61 = vector.broadcast %60 : vector<1x128xf32> to vector<2x128xf32>
    %62 = arith.addf %59, %61 : vector<2x128xf32>
    %cst_33 = arith.constant 0.000000e+00 : f32
    %63 = vector.broadcast %cst_33 : f32 to vector<2x128xf32>
    %64 = arith.maximumf %62, %63 : vector<2x128xf32>
    %c4_34 = arith.constant 4 : index
    %c0_35 = arith.constant 0 : index
    %c0_36 = arith.constant 0 : index
    %65 = vector.load %arg1[%c4_34, %c0_35, %c0_36] : memref<8x128x128xf32, #tpu.memory_space<vmem>>, vector<1x128x128xf32>
    %66 = vector.shape_cast %65 : vector<1x128x128xf32> to vector<128x128xf32>
    %c6 = arith.constant 6 : index
    %c0_37 = arith.constant 0 : index
    %67 = vector.load %arg2[%c6, %c0_37] : memref<12x128xf32, #tpu.memory_space<vmem>>, vector<1x128xf32>
    %c7 = arith.constant 7 : index
    %c0_38 = arith.constant 0 : index
    %68 = vector.load %arg2[%c7, %c0_38] : memref<12x128xf32, #tpu.memory_space<vmem>>, vector<1x128xf32>
    %cst_39 = arith.constant dense<0.000000e+00> : vector<128xf32>
    %69 = vector.multi_reduction <add>, %64, %cst_39 [0] : vector<2x128xf32> to vector<128xf32>
    %70 = vector.shape_cast %69 : vector<128xf32> to vector<1x128xf32>
    %cst_40 = arith.constant dense<0.000000e+00> : vector<1x128xf32>
    %71 = tpu.matmul %70, %66, %cst_40 {dimension_numbers = #tpu.dot_dimension_numbers<[1], [0], [0], [1], [0, 0, 1, 1], [], []>} : vector<1x128xf32>, vector<128x128xf32>, vector<1x128xf32> -> vector<1x128xf32>
    %72 = arith.mulf %64, %64 : vector<2x128xf32>
    %cst_41 = arith.constant dense<0.000000e+00> : vector<128xf32>
    %73 = vector.multi_reduction <add>, %72, %cst_41 [0] : vector<2x128xf32> to vector<128xf32>
    %74 = vector.shape_cast %73 : vector<128xf32> to vector<1x128xf32>
    %cst_42 = arith.constant dense<0.000000e+00> : vector<1x128xf32>
    %75 = tpu.matmul %74, %66, %cst_42 {dimension_numbers = #tpu.dot_dimension_numbers<[1], [0], [0], [1], [0, 0, 1, 1], [], []>} : vector<1x128xf32>, vector<128x128xf32>, vector<1x128xf32> -> vector<1x128xf32>
    %76 = arith.mulf %71, %71 : vector<1x128xf32>
    %77 = arith.subf %75, %76 : vector<1x128xf32>
    %cst_43 = arith.constant 9.99999974E-6 : f32
    %78 = vector.broadcast %cst_43 : f32 to vector<1x128xf32>
    %79 = arith.addf %77, %78 : vector<1x128xf32>
    %80 = math.rsqrt %79 : vector<1x128xf32>
    %81 = arith.mulf %67, %80 : vector<1x128xf32>
    %82 = vector.broadcast %81 : vector<1x128xf32> to vector<2x128xf32>
    %83 = arith.mulf %64, %82 : vector<2x128xf32>
    %84 = arith.mulf %71, %81 : vector<1x128xf32>
    %85 = arith.subf %68, %84 : vector<1x128xf32>
    %86 = vector.broadcast %85 : vector<1x128xf32> to vector<2x128xf32>
    %87 = arith.addf %83, %86 : vector<2x128xf32>
    %c5_44 = arith.constant 5 : index
    %c0_45 = arith.constant 0 : index
    %c0_46 = arith.constant 0 : index
    %88 = vector.load %arg1[%c5_44, %c0_45, %c0_46] : memref<8x128x128xf32, #tpu.memory_space<vmem>>, vector<1x128x128xf32>
    %89 = vector.shape_cast %88 : vector<1x128x128xf32> to vector<128x128xf32>
    %cst_47 = arith.constant dense<0.000000e+00> : vector<2x128xf32>
    %90 = tpu.matmul %87, %89, %cst_47 {dimension_numbers = #tpu.dot_dimension_numbers<[1], [0], [0], [1], [0, 0, 1, 1], [], []>} : vector<2x128xf32>, vector<128x128xf32>, vector<2x128xf32> -> vector<2x128xf32>
    %c8 = arith.constant 8 : index
    %c0_48 = arith.constant 0 : index
    %91 = vector.load %arg2[%c8, %c0_48] : memref<12x128xf32, #tpu.memory_space<vmem>>, vector<1x128xf32>
    %92 = vector.broadcast %91 : vector<1x128xf32> to vector<2x128xf32>
    %93 = arith.addf %90, %92 : vector<2x128xf32>
    %cst_49 = arith.constant 0.000000e+00 : f32
    %94 = vector.broadcast %cst_49 : f32 to vector<2x128xf32>
    %95 = arith.maximumf %93, %94 : vector<2x128xf32>
    %c6_50 = arith.constant 6 : index
    %c0_51 = arith.constant 0 : index
    %c0_52 = arith.constant 0 : index
    %96 = vector.load %arg1[%c6_50, %c0_51, %c0_52] : memref<8x128x128xf32, #tpu.memory_space<vmem>>, vector<1x128x128xf32>
    %97 = vector.shape_cast %96 : vector<1x128x128xf32> to vector<128x128xf32>
    %c9 = arith.constant 9 : index
    %c0_53 = arith.constant 0 : index
    %98 = vector.load %arg2[%c9, %c0_53] : memref<12x128xf32, #tpu.memory_space<vmem>>, vector<1x128xf32>
    %c10 = arith.constant 10 : index
    %c0_54 = arith.constant 0 : index
    %99 = vector.load %arg2[%c10, %c0_54] : memref<12x128xf32, #tpu.memory_space<vmem>>, vector<1x128xf32>
    %cst_55 = arith.constant dense<0.000000e+00> : vector<128xf32>
    %100 = vector.multi_reduction <add>, %95, %cst_55 [0] : vector<2x128xf32> to vector<128xf32>
    %101 = vector.shape_cast %100 : vector<128xf32> to vector<1x128xf32>
    %cst_56 = arith.constant dense<0.000000e+00> : vector<1x128xf32>
    %102 = tpu.matmul %101, %97, %cst_56 {dimension_numbers = #tpu.dot_dimension_numbers<[1], [0], [0], [1], [0, 0, 1, 1], [], []>} : vector<1x128xf32>, vector<128x128xf32>, vector<1x128xf32> -> vector<1x128xf32>
    %103 = arith.mulf %95, %95 : vector<2x128xf32>
    %cst_57 = arith.constant dense<0.000000e+00> : vector<128xf32>
    %104 = vector.multi_reduction <add>, %103, %cst_57 [0] : vector<2x128xf32> to vector<128xf32>
    %105 = vector.shape_cast %104 : vector<128xf32> to vector<1x128xf32>
    %cst_58 = arith.constant dense<0.000000e+00> : vector<1x128xf32>
    %106 = tpu.matmul %105, %97, %cst_58 {dimension_numbers = #tpu.dot_dimension_numbers<[1], [0], [0], [1], [0, 0, 1, 1], [], []>} : vector<1x128xf32>, vector<128x128xf32>, vector<1x128xf32> -> vector<1x128xf32>
    %107 = arith.mulf %102, %102 : vector<1x128xf32>
    %108 = arith.subf %106, %107 : vector<1x128xf32>
    %cst_59 = arith.constant 9.99999974E-6 : f32
    %109 = vector.broadcast %cst_59 : f32 to vector<1x128xf32>
    %110 = arith.addf %108, %109 : vector<1x128xf32>
    %111 = math.rsqrt %110 : vector<1x128xf32>
    %112 = arith.mulf %98, %111 : vector<1x128xf32>
    %113 = vector.broadcast %112 : vector<1x128xf32> to vector<2x128xf32>
    %114 = arith.mulf %95, %113 : vector<2x128xf32>
    %115 = arith.mulf %102, %112 : vector<1x128xf32>
    %116 = arith.subf %99, %115 : vector<1x128xf32>
    %117 = vector.broadcast %116 : vector<1x128xf32> to vector<2x128xf32>
    %118 = arith.addf %114, %117 : vector<2x128xf32>
    %c7_60 = arith.constant 7 : index
    %c0_61 = arith.constant 0 : index
    %c0_62 = arith.constant 0 : index
    %119 = vector.load %arg1[%c7_60, %c0_61, %c0_62] : memref<8x128x128xf32, #tpu.memory_space<vmem>>, vector<1x128x128xf32>
    %120 = vector.shape_cast %119 : vector<1x128x128xf32> to vector<128x128xf32>
    %cst_63 = arith.constant dense<0.000000e+00> : vector<2x128xf32>
    %121 = tpu.matmul %118, %120, %cst_63 {dimension_numbers = #tpu.dot_dimension_numbers<[1], [0], [0], [1], [0, 0, 1, 1], [], []>} : vector<2x128xf32>, vector<128x128xf32>, vector<2x128xf32> -> vector<2x128xf32>
    %c11 = arith.constant 11 : index
    %c0_64 = arith.constant 0 : index
    %122 = vector.load %arg2[%c11, %c0_64] : memref<12x128xf32, #tpu.memory_space<vmem>>, vector<1x128xf32>
    %123 = vector.broadcast %122 : vector<1x128xf32> to vector<2x128xf32>
    %124 = arith.addf %121, %123 : vector<2x128xf32>
    %c0_65 = arith.constant 0 : index
    %c0_66 = arith.constant 0 : index
    %125 = vector.load %arg3[%c0_65, %c0_66] : memref<2x128xf32, #tpu.memory_space<vmem>>, vector<2x128xf32>
    tpu.vector_store %arg3[%c0_65, %c0_66], %124 {strides = array<i32>} : memref<2x128xf32, #tpu.memory_space<vmem>>, vector<2x128xf32>,
    return
  }
}

</mosaic_0001>

<llo_original>
// kernel: tpu_custom_call.1
$region0: #{tpu_custom_call.1}
  #allocation0 [shape = 'u32[]', space=smem, size = 0x4, offset = 0x4, fixed_abs, tag = 'smem constant byte address 0x4 - core index']
  #allocation1 [shape = 'u32[144,128]{1,0:T(1,128)}', space=vmem, size = 0x12000, scoped, tag = 'internal scratch']
  %s0 = inlined_call_operand.hbm [shape: f32[2,128], index: 0, kind: input, shape index: {}]
  %s1 = inlined_call_operand.hbm [shape: f32[8,128,128], index: 1, kind: input, shape index: {}]
  %s2 = inlined_call_operand.hbm [shape: f32[12,128], index: 2, kind: input, shape index: {}]
  %s3 = inlined_call_operand.hbm [shape: f32[2,128], index: 3, kind: output, shape index: {}]
  %s4 = sld [smem:[#allocation0]]
  $region34: #{tpu_custom_call.1} parent=0
    _
  %s6 = ssub.s32 1, %s4
  %s7 = scalar_select 0, %s6, %s4
  $region1: #{tpu_custom_call.1} parent=0
    #allocation2 [shape = 'u8[1024]{0}', space=vmem, size = 0x400, scoped, tag = 'input window, operand 0, single buffered']
    #allocation3 [shape = 's32[1]{0}', space=sflag, size = 0x4, scoped, tag = 'scoped memory for tpu_custom_call.1']
    #allocation4 [shape = 's32[1]{0}', space=sflag, size = 0x4, scoped, tag = 'scoped memory for tpu_custom_call.1']
    #allocation5 [shape = 'u8[524288]{0}', space=vmem, size = 0x80000, scoped, tag = 'input window, operand 1, single buffered']
    #allocation6 [shape = 's32[1]{0}', space=sflag, size = 0x4, scoped, tag = 'scoped memory for tpu_custom_call.1']
    #allocation7 [shape = 'u8[8192]{0}', space=vmem, size = 0x2000, scoped, tag = 'input window, operand 2, single buffered']
    #allocation8 [shape = 'u8[1024]{0}', space=vmem, size = 0x400, scoped, tag = 'output window, operand 0, single buffered']
    %8 = vsyncpa [#allocation3], 0
    %9 = vsyncpa [#allocation6], 0
    %10 = vsyncpa [#allocation4], 0
    // Predicated region
    $region2: #{tpu_custom_call.1} parent=1 // pred_check
      _
    $region3: #{tpu_custom_call.1} parent=1 // pred_check_branch
      %12 = sbr.rel (0) target = $region5
    $region4: #{tpu_custom_call.1} parent=1 // pred_region
      %s14 = ssub.s32 32, 32
      %15 = vsyncadd [#allocation3], %s14
      %s17 = sshll.u32 [#allocation2], 4
      %s18 = int_to_ptr.vmem [resolvable:$true] %s17
      %20 = dma.hbm_to_vmem [thread:$0]  %s0, 32, %s18, [#allocation3]
    $region5: #{tpu_custom_call.1} parent=1 // pred_fallthru
      _
    // Predicated region
    $region6: #{tpu_custom_call.1} parent=1 // pred_check
      _
    $region7: #{tpu_custom_call.1} parent=1 // pred_check_branch
      %22 = sbr.rel (0) target = $region9
    $region8: #{tpu_custom_call.1} parent=1 // pred_region
      %s24 = ssub.s32 16384, 16384
      %25 = vsyncadd [#allocation6], %s24
      %s26 = sshll.u32 [#allocation5], 4
      %s27 = int_to_ptr.vmem [resolvable:$true] %s26
      %32 = dma.hbm_to_vmem [thread:$0]  %s1, 16384, %s27, [#allocation6], 128, 128, 8
    $region9: #{tpu_custom_call.1} parent=1 // pred_fallthru
      _
    // Predicated region
    $region10: #{tpu_custom_call.1} parent=1 // pred_check
      _
    $region11: #{tpu_custom_call.1} parent=1 // pred_check_branch
      %34 = sbr.rel (0) target = $region13
    $region12: #{tpu_custom_call.1} parent=1 // pred_region
      %s36 = ssub.s32 256, 256
      %37 = vsyncadd [#allocation6], %s36
      %s38 = sshll.u32 [#allocation7], 4
      %s39 = int_to_ptr.vmem [resolvable:$true] %s38
      %44 = dma.hbm_to_vmem [thread:$0]  %s2, 256, %s39, [#allocation6], 128, 128, 8
    $region13: #{tpu_custom_call.1} parent=1 // pred_fallthru
      _
    // Predicated region
    $region14: #{tpu_custom_call.1} parent=1 // pred_check
      _
    $region15: #{tpu_custom_call.1} parent=1 // pred_check_branch
      %46 = sbr.rel (0) target = $region17
    $region16: #{tpu_custom_call.1} parent=1 // pred_region
      %47 = dma.done [#allocation3], 32
    $region17: #{tpu_custom_call.1} parent=1 // pred_fallthru
      _
    // Predicated region
    $region18: #{tpu_custom_call.1} parent=1 // pred_check
      _
    $region19: #{tpu_custom_call.1} parent=1 // pred_check_branch
      %49 = sbr.rel (0) target = $region21
    $region20: #{tpu_custom_call.1} parent=1 // pred_region
      %50 = dma.done [#allocation6], 16384
    $region21: #{tpu_custom_call.1} parent=1 // pred_fallthru
      _
    // Predicated region
    $region22: #{tpu_custom_call.1} parent=1 // pred_check
      _
    $region23: #{tpu_custom_call.1} parent=1 // pred_check_branch
      %52 = sbr.rel (0) target = $region25
    $region24: #{tpu_custom_call.1} parent=1 // pred_region
      %53 = dma.done [#allocation6], 256
    $region25: #{tpu_custom_call.1} parent=1 // pred_fallthru
      _
    %v54 = vld [vmem:[#allocation2] sm:$0x3]
    %v55 = vmax.f32 %v54, 0.0
    %v56 = vld [vmem:[#allocation5] sm:$0xff]
    %v57 = vld [vmem:[#allocation5 + $0x8] sm:$0xff]
    %v58 = vld [vmem:[#allocation5 + $0x10] sm:$0xff]
    %v59 = vld [vmem:[#allocation5 + $0x18] sm:$0xff]
    %v60 = vld [vmem:[#allocation5 + $0x20] sm:$0xff]
    %v61 = vld [vmem:[#allocation5 + $0x28] sm:$0xff]
    %v62 = vld [vmem:[#allocation5 + $0x30] sm:$0xff]
    %v63 = vld [vmem:[#allocation5 + $0x38] sm:$0xff]
    %v64 = vld [vmem:[#allocation5 + $0x40] sm:$0xff]
    %v65 = vld [vmem:[#allocation5 + $0x48] sm:$0xff]
    %v66 = vld [vmem:[#allocation5 + $0x50] sm:$0xff]
    %v67 = vld [vmem:[#allocation5 + $0x58] sm:$0xff]
    %v68 = vld [vmem:[#allocation5 + $0x60] sm:$0xff]
    %v69 = vld [vmem:[#allocation5 + $0x68] sm:$0xff]
    %v70 = vld [vmem:[#allocation5 + $0x70] sm:$0xff]
    %v71 = vld [vmem:[#allocation5 + $0x78] sm:$0xff]
    %v72 = vld [vmem:[#allocation7] sm:$0x1]
    %v73 = vld [vmem:[#allocation7 + $0x1] sm:$0x1]
    %vm74 = vcmask 1041408
    %v75 = vsel %vm74, %v55, 0.0
    %v76 = vrot.slane %v75, 4
    %v77 = vadd.f32 %v75, %v76
    %v78 = vrot.slane %v77, 2
    %v79 = vadd.f32 %v77, %v78
    %v80 = vrot.slane %v79, 1
    %v81 = vadd.f32 %v79, %v80
    %82 = vmatprep.subr.mxu0 0.0
    %83 = vmatpush1.msra.mxu0 %v71
    %84 = vmatprep.subr.mxu0 0.0
    %85 = vmatpush1.msra.mxu0 %v70
    %86 = vmatprep.subr.mxu0 0.0
    %87 = vmatpush1.msra.mxu0 %v69
    %88 = vmatprep.subr.mxu0 0.0
    %89 = vmatpush1.msra.mxu0 %v68
    %90 = vmatprep.subr.mxu0 0.0
    %91 = vmatpush1.msra.mxu0 %v67
    %92 = vmatprep.subr.mxu0 0.0
    %93 = vmatpush1.msra.mxu0 %v66
    %94 = vmatprep.subr.mxu0 0.0
    %95 = vmatpush1.msra.mxu0 %v65
    %96 = vmatprep.subr.mxu0 0.0
    %97 = vmatpush1.msra.mxu0 %v64
    %98 = vmatprep.subr.mxu0 0.0
    %99 = vmatpush1.msra.mxu0 %v63
    %100 = vmatprep.subr.mxu0 0.0
    %101 = vmatpush1.msra.mxu0 %v62
    %102 = vmatprep.subr.mxu0 0.0
    %103 = vmatpush1.msra.mxu0 %v61
    %104 = vmatprep.subr.mxu0 0.0
    %105 = vmatpush1.msra.mxu0 %v60
    %106 = vmatprep.subr.mxu0 0.0
    %107 = vmatpush1.msra.mxu0 %v59
    %108 = vmatprep.subr.mxu0 0.0
    %109 = vmatpush1.msra.mxu0 %v58
    %110 = vmatprep.subr.mxu0 0.0
    %111 = vmatpush1.msra.mxu0 %v57
    %112 = vmatprep.subr.mxu0 0.0
    %113 = vmatpush1.msra.mxu0 %v56
    %114 = vmatprep.subr.mxu0 0.0
    %115 = vmatpush2.msra.mxu0 0.0
    %116 = vmatprep.subr.mxu0 0.0
    %117 = vmatpush2.msra.mxu0 0.0
    %118 = vmatprep.subr.mxu0 0.0
    %119 = vmatpush2.msra.mxu0 0.0
    %120 = vmatprep.subr.mxu0 0.0
    %121 = vmatpush2.msra.mxu0 0.0
    %122 = vmatprep.subr.mxu0 0.0
    %123 = vmatpush2.msra.mxu0 0.0
    %124 = vmatprep.subr.mxu0 0.0
    %125 = vmatpush2.msra.mxu0 0.0
    %126 = vmatprep.subr.mxu0 0.0
    %127 = vmatpush2.msra.mxu0 0.0
    %128 = vmatprep.subr.mxu0 0.0
    %129 = vmatpush2.msra.mxu0 0.0
    %130 = vmatprep.subr.mxu0 0.0
    %131 = vmatpush2.msra.mxu0 0.0
    %132 = vmatprep.subr.mxu0 0.0
    %133 = vmatpush2.msra.mxu0 0.0
    %134 = vmatprep.subr.mxu0 0.0
    %135 = vmatpush2.msra.mxu0 0.0
    %136 = vmatprep.subr.mxu0 0.0
    %137 = vmatpush2.msra.mxu0 0.0
    %138 = vmatprep.subr.mxu0 0.0
    %139 = vmatpush2.msra.mxu0 0.0
    %140 = vmatprep.subr.mxu0 0.0
    %141 = vmatpush2.msra.mxu0 0.0
    %142 = vmatprep.subr.mxu0 0.0
    %143 = vmatpush2.msra.mxu0 0.0
    %144 = vmatprep.subr.mxu0 0.0
    %145 = vmatpush2.msra.mxu0 0.0
    %146 = vmatprep.mubr.f32.mxu0 0.0
    %147 = vmatmul.mubr.f32.gmra.mxu0 %v81
    %v148 = vpop.f32.mrf.mxu0
    %v149 = vadd.f32 0.0, %v148
    %v150 = vpop.f32.mrf.mxu0
    %151 = vdwg.mxu0
    %v152 = vmul.f32 %v55, %v55
    %v153 = vsel %vm74, %v152, 0.0
    %v154 = vrot.slane %v153, 4
    %v155 = vadd.f32 %v153, %v154
    %v156 = vrot.slane %v155, 2
    %v157 = vadd.f32 %v155, %v156
    %v158 = vrot.slane %v157, 1
    %v159 = vadd.f32 %v157, %v158
    %160 = vmatprep.subr.mxu0 0.0
    %161 = vmatpush1.msra.mxu0 %v71
    %162 = vmatprep.subr.mxu0 0.0
    %163 = vmatpush1.msra.mxu0 %v70
    %164 = vmatprep.subr.mxu0 0.0
    %165 = vmatpush1.msra.mxu0 %v69
    %166 = vmatprep.subr.mxu0 0.0
    %167 = vmatpush1.msra.mxu0 %v68
    %168 = vmatprep.subr.mxu0 0.0
    %169 = vmatpush1.msra.mxu0 %v67
    %170 = vmatprep.subr.mxu0 0.0
    %171 = vmatpush1.msra.mxu0 %v66
    %172 = vmatprep.subr.mxu0 0.0
    %173 = vmatpush1.msra.mxu0 %v65
    %174 = vmatprep.subr.mxu0 0.0
    %175 = vmatpush1.msra.mxu0 %v64
    %176 = vmatprep.subr.mxu0 0.0
    %177 = vmatpush1.msra.mxu0 %v63
    %178 = vmatprep.subr.mxu0 0.0
    %179 = vmatpush1.msra.mxu0 %v62
    %180 = vmatprep.subr.mxu0 0.0
    %181 = vmatpush1.msra.mxu0 %v61
    %182 = vmatprep.subr.mxu0 0.0
    %183 = vmatpush1.msra.mxu0 %v60
    %184 = vmatprep.subr.mxu0 0.0
    %185 = vmatpush1.msra.mxu0 %v59
    %186 = vmatprep.subr.mxu0 0.0
    %187 = vmatpush1.msra.mxu0 %v58
    %188 = vmatprep.subr.mxu0 0.0
    %189 = vmatpush1.msra.mxu0 %v57
    %190 = vmatprep.subr.mxu0 0.0
    %191 = vmatpush1.msra.mxu0 %v56
    %192 = vmatprep.subr.mxu0 0.0
    %193 = vmatpush2.msra.mxu0 0.0
    %194 = vmatprep.subr.mxu0 0.0
    %195 = vmatpush2.msra.mxu0 0.0
    %196 = vmatprep.subr.mxu0 0.0
    %197 = vmatpush2.msra.mxu0 0.0
    %198 = vmatprep.subr.mxu0 0.0
    %199 = vmatpush2.msra.mxu0 0.0
    %200 = vmatprep.subr.mxu0 0.0
    %201 = vmatpush2.msra.mxu0 0.0
    %202 = vmatprep.subr.mxu0 0.0
    %203 = vmatpush2.msra.mxu0 0.0
    %204 = vmatprep.subr.mxu0 0.0
    %205 = vmatpush2.msra.mxu0 0.0
    %206 = vmatprep.subr.mxu0 0.0
    %207 = vmatpush2.msra.mxu0 0.0
    %208 = vmatprep.subr.mxu0 0.0
    %209 = vmatpush2.msra.mxu0 0.0
    %210 = vmatprep.subr.mxu0 0.0
    %211 = vmatpush2.msra.mxu0 0.0
    %212 = vmatprep.subr.mxu0 0.0
    %213 = vmatpush2.msra.mxu0 0.0
    %214 = vmatprep.subr.mxu0 0.0
    %215 = vmatpush2.msra.mxu0 0.0
    %216 = vmatprep.subr.mxu0 0.0
    %217 = vmatpush2.msra.mxu0 0.0
    %218 = vmatprep.subr.mxu0 0.0
    %219 = vmatpush2.msra.mxu0 0.0
    %220 = vmatprep.subr.mxu0 0.0
    %221 = vmatpush2.msra.mxu0 0.0
    %222 = vmatprep.subr.mxu0 0.0
    %223 = vmatpush2.msra.mxu0 0.0
    %224 = vmatprep.mubr.f32.mxu0 0.0
    %225 = vmatmul.mubr.f32.gmra.mxu0 %v159
    %v226 = vpop.f32.mrf.mxu0
    %v227 = vadd.f32 0.0, %v226
    %v228 = vpop.f32.mrf.mxu0
    %229 = vdwg.mxu0
    %v230 = vmul.f32 %v149, %v149
    %v231 = vsub.f32 %v227, %v230
    %v232 = vadd.f32 %v231, 1e-05
    %v233 = vrsqrt.pop %v232
    %v234 = vmul.f32 %v72, %v233
    %v235 = vlaneseq
    %v236 = vshrl.u32 %v235, 7
    %v237 = vsub.s32 0, %v236
    %v238 = vrot.slane %v234, %v237
    %v239 = vmul.f32 %v55, %v238
    %v240 = vmul.f32 %v149, %v234
    %v241 = vsub.f32 %v73, %v240
    %v242 = vlaneseq
    %v243 = vshrl.u32 %v242, 7
    %v244 = vsub.s32 0, %v243
    %v245 = vrot.slane %v241, %v244
    %v246 = vadd.f32 %v239, %v245
    %s247 = scalar_lea.vmem [#allocation5], 128
    %v248 = vld [vmem:[%s247] sm:$0xff]
    %v249 = vld [vmem:[%s247 + $0x8] sm:$0xff]
    %v250 = vld [vmem:[%s247 + $0x10] sm:$0xff]
    %v251 = vld [vmem:[%s247 + $0x18] sm:$0xff]
    %v252 = vld [vmem:[%s247 + $0x20] sm:$0xff]
    %v253 = vld [vmem:[%s247 + $0x28] sm:$0xff]
    %v254 = vld [vmem:[%s247 + $0x30] sm:$0xff]
    %v255 = vld [vmem:[%s247 + $0x38] sm:$0xff]
    %v256 = vld [vmem:[%s247 + $0x40] sm:$0xff]
    %v257 = vld [vmem:[%s247 + $0x48] sm:$0xff]
    %v258 = vld [vmem:[%s247 + $0x50] sm:$0xff]
    %v259 = vld [vmem:[%s247 + $0x58] sm:$0xff]
    %v260 = vld [vmem:[%s247 + $0x60] sm:$0xff]
    %v261 = vld [vmem:[%s247 + $0x68] sm:$0xff]
    %v262 = vld [vmem:[%s247 + $0x70] sm:$0xff]
    %v263 = vld [vmem:[%s247 + $0x78] sm:$0xff]
    %v264 = vld [vmem:[#allocation7 + $0x2] sm:$0x1]
    %v265 = vlaneseq
    %v266 = vshrl.u32 %v265, 7
    %v267 = vsub.s32 0, %v266
    %v268 = vrot.slane %v264, %v267
    %269 = vmatprep.subr.mxu0 0.0
    %270 = vmatpush1.msra.mxu0 %v263
    %271 = vmatprep.subr.mxu0 0.0
    %272 = vmatpush1.msra.mxu0 %v262
    %273 = vmatprep.subr.mxu0 0.0
    %274 = vmatpush1.msra.mxu0 %v261
    %275 = vmatprep.subr.mxu0 0.0
    %276 = vmatpush1.msra.mxu0 %v260
    %277 = vmatprep.subr.mxu0 0.0
    %278 = vmatpush1.msra.mxu0 %v259
    %279 = vmatprep.subr.mxu0 0.0
    %280 = vmatpush1.msra.mxu0 %v258
    %281 = vmatprep.subr.mxu0 0.0
    %282 = vmatpush1.msra.mxu0 %v257
    %283 = vmatprep.subr.mxu0 0.0
    %284 = vmatpush1.msra.mxu0 %v256
    %285 = vmatprep.subr.mxu0 0.0
    %286 = vmatpush1.msra.mxu0 %v255
    %287 = vmatprep.subr.mxu0 0.0
    %288 = vmatpush1.msra.mxu0 %v254
    %289 = vmatprep.subr.mxu0 0.0
    %290 = vmatpush1.msra.mxu0 %v253
    %291 = vmatprep.subr.mxu0 0.0
    %292 = vmatpush1.msra.mxu0 %v252
    %293 = vmatprep.subr.mxu0 0.0
    %294 = vmatpush1.msra.mxu0 %v251
    %295 = vmatprep.subr.mxu0 0.0
    %296 = vmatpush1.msra.mxu0 %v250
    %297 = vmatprep.subr.mxu0 0.0
    %298 = vmatpush1.msra.mxu0 %v249
    %299 = vmatprep.subr.mxu0 0.0
    %300 = vmatpush1.msra.mxu0 %v248
    %301 = vmatprep.subr.mxu0 0.0
    %302 = vmatpush2.msra.mxu0 0.0
    %303 = vmatprep.subr.mxu0 0.0
    %304 = vmatpush2.msra.mxu0 0.0
    %305 = vmatprep.subr.mxu0 0.0
    %306 = vmatpush2.msra.mxu0 0.0
    %307 = vmatprep.subr.mxu0 0.0
    %308 = vmatpush2.msra.mxu0 0.0
    %309 = vmatprep.subr.mxu0 0.0
    %310 = vmatpush2.msra.mxu0 0.0
    %311 = vmatprep.subr.mxu0 0.0
    %312 = vmatpush2.msra.mxu0 0.0
    %313 = vmatprep.subr.mxu0 0.0
    %314 = vmatpush2.msra.mxu0 0.0
    %315 = vmatprep.subr.mxu0 0.0
    %316 = vmatpush2.msra.mxu0 0.0
    %317 = vmatprep.subr.mxu0 0.0
    %318 = vmatpush2.msra.mxu0 0.0
    %319 = vmatprep.subr.mxu0 0.0
    %320 = vmatpush2.msra.mxu0 0.0
    %321 = vmatprep.subr.mxu0 0.0
    %322 = vmatpush2.msra.mxu0 0.0
    %323 = vmatprep.subr.mxu0 0.0
    %324 = vmatpush2.msra.mxu0 0.0
    %325 = vmatprep.subr.mxu0 0.0
    %326 = vmatpush2.msra.mxu0 0.0
    %327 = vmatprep.subr.mxu0 0.0
    %328 = vmatpush2.msra.mxu0 0.0
    %329 = vmatprep.subr.mxu0 0.0
    %330 = vmatpush2.msra.mxu0 0.0
    %331 = vmatprep.subr.mxu0 0.0
    %332 = vmatpush2.msra.mxu0 0.0
    %333 = vmatprep.mubr.f32.mxu0 0.0
    %334 = vmatmul.mubr.f32.gmra.mxu0 %v246
    %v335 = vpop.f32.mrf.mxu0
    %v336 = vadd.f32 %v268, %v335
    %v337 = vpop.f32.mrf.mxu0
    %338 = vdwg.mxu0
    %v339 = vmax.f32 %v336, 0.0
    %s340 = scalar_lea.vmem [#allocation5], 256
    %v341 = vld [vmem:[%s340] sm:$0xff]
    %v342 = vld [vmem:[%s340 + $0x8] sm:$0xff]
    %v343 = vld [vmem:[%s340 + $0x10] sm:$0xff]
    %v344 = vld [vmem:[%s340 + $0x18] sm:$0xff]
    %v345 = vld [vmem:[%s340 + $0x20] sm:$0xff]
    %v346 = vld [vmem:[%s340 + $0x28] sm:$0xff]
    %v347 = vld [vmem:[%s340 + $0x30] sm:$0xff]
    %v348 = vld [vmem:[%s340 + $0x38] sm:$0xff]
    %v349 = vld [vmem:[%s340 + $0x40] sm:$0xff]
    %v350 = vld [vmem:[%s340 + $0x48] sm:$0xff]
    %v351 = vld [vmem:[%s340 + $0x50] sm:$0xff]
    %v352 = vld [vmem:[%s340 + $0x58] sm:$0xff]
    %v353 = vld [vmem:[%s340 + $0x60] sm:$0xff]
    %v354 = vld [vmem:[%s340 + $0x68] sm:$0xff]
    %v355 = vld [vmem:[%s340 + $0x70] sm:$0xff]
    %v356 = vld [vmem:[%s340 + $0x78] sm:$0xff]
    %v357 = vld [vmem:[#allocation7 + $0x3] sm:$0x1]
    %v358 = vld [vmem:[#allocation7 + $0x4] sm:$0x1]
    %v359 = vsel %vm74, %v339, 0.0
    %v360 = vrot.slane %v359, 4
    %v361 = vadd.f32 %v359, %v360
    %v362 = vrot.slane %v361, 2
    %v363 = vadd.f32 %v361, %v362
    %v364 = vrot.slane %v363, 1
    %v365 = vadd.f32 %v363, %v364
    %366 = vmatprep.subr.mxu0 0.0
    %367 = vmatpush1.msra.mxu0 %v356
    %368 = vmatprep.subr.mxu0 0.0
    %369 = vmatpush1.msra.mxu0 %v355
    %370 = vmatprep.subr.mxu0 0.0
    %371 = vmatpush1.msra.mxu0 %v354
    %372 = vmatprep.subr.mxu0 0.0
    %373 = vmatpush1.msra.mxu0 %v353
    %374 = vmatprep.subr.mxu0 0.0
    %375 = vmatpush1.msra.mxu0 %v352
    %376 = vmatprep.subr.mxu0 0.0
    %377 = vmatpush1.msra.mxu0 %v351
    %378 = vmatprep.subr.mxu0 0.0
    %379 = vmatpush1.msra.mxu0 %v350
    %380 = vmatprep.subr.mxu0 0.0
    %381 = vmatpush1.msra.mxu0 %v349
    %382 = vmatprep.subr.mxu0 0.0
    %383 = vmatpush1.msra.mxu0 %v348
    %384 = vmatprep.subr.mxu0 0.0
    %385 = vmatpush1.msra.mxu0 %v347
    %386 = vmatprep.subr.mxu0 0.0
    %387 = vmatpush1.msra.mxu0 %v346
    %388 = vmatprep.subr.mxu0 0.0
    %389 = vmatpush1.msra.mxu0 %v345
    %390 = vmatprep.subr.mxu0 0.0
    %391 = vmatpush1.msra.mxu0 %v344
    %392 = vmatprep.subr.mxu0 0.0
    %393 = vmatpush1.msra.mxu0 %v343
    %394 = vmatprep.subr.mxu0 0.0
    %395 = vmatpush1.msra.mxu0 %v342
    %396 = vmatprep.subr.mxu0 0.0
    %397 = vmatpush1.msra.mxu0 %v341
    %398 = vmatprep.subr.mxu0 0.0
    %399 = vmatpush2.msra.mxu0 0.0
    %400 = vmatprep.subr.mxu0 0.0
    %401 = vmatpush2.msra.mxu0 0.0
    %402 = vmatprep.subr.mxu0 0.0
    %403 = vmatpush2.msra.mxu0 0.0
    %404 = vmatprep.subr.mxu0 0.0
    %405 = vmatpush2.msra.mxu0 0.0
    %406 = vmatprep.subr.mxu0 0.0
    %407 = vmatpush2.msra.mxu0 0.0
    %408 = vmatprep.subr.mxu0 0.0
    %409 = vmatpush2.msra.mxu0 0.0
    %410 = vmatprep.subr.mxu0 0.0
    %411 = vmatpush2.msra.mxu0 0.0
    %412 = vmatprep.subr.mxu0 0.0
    %413 = vmatpush2.msra.mxu0 0.0
    %414 = vmatprep.subr.mxu0 0.0
    %415 = vmatpush2.msra.mxu0 0.0
    %416 = vmatprep.subr.mxu0 0.0
    %417 = vmatpush2.msra.mxu0 0.0
    %418 = vmatprep.subr.mxu0 0.0
    %419 = vmatpush2.msra.mxu0 0.0
    %420 = vmatprep.subr.mxu0 0.0
    %421 = vmatpush2.msra.mxu0 0.0
    %422 = vmatprep.subr.mxu0 0.0
    %423 = vmatpush2.msra.mxu0 0.0
    %424 = vmatprep.subr.mxu0 0.0
    %425 = vmatpush2.msra.mxu0 0.0
    %426 = vmatprep.subr.mxu0 0.0
    %427 = vmatpush2.msra.mxu0 0.0
    %428 = vmatprep.subr.mxu0 0.0
    %429 = vmatpush2.msra.mxu0 0.0
    %430 = vmatprep.mubr.f32.mxu0 0.0
    %431 = vmatmul.mubr.f32.gmra.mxu0 %v365
    %v432 = vpop.f32.mrf.mxu0
    %v433 = vadd.f32 0.0, %v432
    %v434 = vpop.f32.mrf.mxu0
    %435 = vdwg.mxu0
    %v436 = vmul.f32 %v339, %v339
    %v437 = vsel %vm74, %v436, 0.0
    %v438 = vrot.slane %v437, 4
    %v439 = vadd.f32 %v437, %v438
    %v440 = vrot.slane %v439, 2
    %v441 = vadd.f32 %v439, %v440
    %v442 = vrot.slane %v441, 1
    %v443 = vadd.f32 %v441, %v442
    %444 = vmatprep.subr.mxu0 0.0
    %445 = vmatpush1.msra.mxu0 %v356
    %446 = vmatprep.subr.mxu0 0.0
    %447 = vmatpush1.msra.mxu0 %v355
    %448 = vmatprep.subr.mxu0 0.0
    %449 = vmatpush1.msra.mxu0 %v354
    %450 = vmatprep.subr.mxu0 0.0
    %451 = vmatpush1.msra.mxu0 %v353
    %452 = vmatprep.subr.mxu0 0.0
    %453 = vmatpush1.msra.mxu0 %v352
    %454 = vmatprep.subr.mxu0 0.0
    %455 = vmatpush1.msra.mxu0 %v351
    %456 = vmatprep.subr.mxu0 0.0
    %457 = vmatpush1.msra.mxu0 %v350
    %458 = vmatprep.subr.mxu0 0.0
    %459 = vmatpush1.msra.mxu0 %v349
    %460 = vmatprep.subr.mxu0 0.0
    %461 = vmatpush1.msra.mxu0 %v348
    %462 = vmatprep.subr.mxu0 0.0
    %463 = vmatpush1.msra.mxu0 %v347
    %464 = vmatprep.subr.mxu0 0.0
    %465 = vmatpush1.msra.mxu0 %v346
    %466 = vmatprep.subr.mxu0 0.0
    %467 = vmatpush1.msra.mxu0 %v345
    %468 = vmatprep.subr.mxu0 0.0
    %469 = vmatpush1.msra.mxu0 %v344
    %470 = vmatprep.subr.mxu0 0.0
    %471 = vmatpush1.msra.mxu0 %v343
    %472 = vmatprep.subr.mxu0 0.0
    %473 = vmatpush1.msra.mxu0 %v342
    %474 = vmatprep.subr.mxu0 0.0
    %475 = vmatpush1.msra.mxu0 %v341
    %476 = vmatprep.subr.mxu0 0.0
    %477 = vmatpush2.msra.mxu0 0.0
    %478 = vmatprep.subr.mxu0 0.0
    %479 = vmatpush2.msra.mxu0 0.0
    %480 = vmatprep.subr.mxu0 0.0
    %481 = vmatpush2.msra.mxu0 0.0
    %482 = vmatprep.subr.mxu0 0.0
    %483 = vmatpush2.msra.mxu0 0.0
    %484 = vmatprep.subr.mxu0 0.0
    %485 = vmatpush2.msra.mxu0 0.0
    %486 = vmatprep.subr.mxu0 0.0
    %487 = vmatpush2.msra.mxu0 0.0
    %488 = vmatprep.subr.mxu0 0.0
    %489 = vmatpush2.msra.mxu0 0.0
    %490 = vmatprep.subr.mxu0 0.0
    %491 = vmatpush2.msra.mxu0 0.0
    %492 = vmatprep.subr.mxu0 0.0
    %493 = vmatpush2.msra.mxu0 0.0
    %494 = vmatprep.subr.mxu0 0.0
    %495 = vmatpush2.msra.mxu0 0.0
    %496 = vmatprep.subr.mxu0 0.0
    %497 = vmatpush2.msra.mxu0 0.0
    %498 = vmatprep.subr.mxu0 0.0
    %499 = vmatpush2.msra.mxu0 0.0
    %500 = vmatprep.subr.mxu0 0.0
    %501 = vmatpush2.msra.mxu0 0.0
    %502 = vmatprep.subr.mxu0 0.0
    %503 = vmatpush2.msra.mxu0 0.0
    %504 = vmatprep.subr.mxu0 0.0
    %505 = vmatpush2.msra.mxu0 0.0
    %506 = vmatprep.subr.mxu0 0.0
    %507 = vmatpush2.msra.mxu0 0.0
    %508 = vmatprep.mubr.f32.mxu0 0.0
    %509 = vmatmul.mubr.f32.gmra.mxu0 %v443
    %v510 = vpop.f32.mrf.mxu0
    %v511 = vadd.f32 0.0, %v510
    %v512 = vpop.f32.mrf.mxu0
    %513 = vdwg.mxu0
    %v514 = vmul.f32 %v433, %v433
    %v515 = vsub.f32 %v511, %v514
    %v516 = vadd.f32 %v515, 1e-05
    %v517 = vrsqrt.pop %v516
    %v518 = vmul.f32 %v357, %v517
    %v519 = vlaneseq
    %v520 = vshrl.u32 %v519, 7
    %v521 = vsub.s32 0, %v520
    %v522 = vrot.slane %v518, %v521
    %v523 = vmul.f32 %v339, %v522
    %v524 = vmul.f32 %v433, %v518
    %v525 = vsub.f32 %v358, %v524
    %v526 = vlaneseq
    %v527 = vshrl.u32 %v526, 7
    %v528 = vsub.s32 0, %v527
    %v529 = vrot.slane %v525, %v528
    %v530 = vadd.f32 %v523, %v529
    %s531 = scalar_lea.vmem [#allocation5], 384
    %v532 = vld [vmem:[%s531] sm:$0xff]
    %v533 = vld [vmem:[%s531 + $0x8] sm:$0xff]
    %v534 = vld [vmem:[%s531 + $0x10] sm:$0xff]
    %v535 = vld [vmem:[%s531 + $0x18] sm:$0xff]
    %v536 = vld [vmem:[%s531 + $0x20] sm:$0xff]
    %v537 = vld [vmem:[%s531 + $0x28] sm:$0xff]
    %v538 = vld [vmem:[%s531 + $0x30] sm:$0xff]
    %v539 = vld [vmem:[%s531 + $0x38] sm:$0xff]
    %v540 = vld [vmem:[%s531 + $0x40] sm:$0xff]
    %v541 = vld [vmem:[%s531 + $0x48] sm:$0xff]
    %v542 = vld [vmem:[%s531 + $0x50] sm:$0xff]
    %v543 = vld [vmem:[%s531 + $0x58] sm:$0xff]
    %v544 = vld [vmem:[%s531 + $0x60] sm:$0xff]
    %v545 = vld [vmem:[%s531 + $0x68] sm:$0xff]
    %v546 = vld [vmem:[%s531 + $0x70] sm:$0xff]
    %v547 = vld [vmem:[%s531 + $0x78] sm:$0xff]
    %v548 = vld [vmem:[#allocation7 + $0x5] sm:$0x1]
    %v549 = vlaneseq
    %v550 = vshrl.u32 %v549, 7
    %v551 = vsub.s32 0, %v550
    %v552 = vrot.slane %v548, %v551
    %553 = vmatprep.subr.mxu0 0.0
    %554 = vmatpush1.msra.mxu0 %v547
    %555 = vmatprep.subr.mxu0 0.0
    %556 = vmatpush1.msra.mxu0 %v546
    %557 = vmatprep.subr.mxu0 0.0
    %558 = vmatpush1.msra.mxu0 %v545
    %559 = vmatprep.subr.mxu0 0.0
    %560 = vmatpush1.msra.mxu0 %v544
    %561 = vmatprep.subr.mxu0 0.0
    %562 = vmatpush1.msra.mxu0 %v543
    %563 = vmatprep.subr.mxu0 0.0
    %564 = vmatpush1.msra.mxu0 %v542
    %565 = vmatprep.subr.mxu0 0.0
    %566 = vmatpush1.msra.mxu0 %v541
    %567 = vmatprep.subr.mxu0 0.0
    %568 = vmatpush1.msra.mxu0 %v540
    %569 = vmatprep.subr.mxu0 0.0
    %570 = vmatpush1.msra.mxu0 %v539
    %571 = vmatprep.subr.mxu0 0.0
    %572 = vmatpush1.msra.mxu0 %v538
    %573 = vmatprep.subr.mxu0 0.0
    %574 = vmatpush1.msra.mxu0 %v537
    %575 = vmatprep.subr.mxu0 0.0
    %576 = vmatpush1.msra.mxu0 %v536
    %577 = vmatprep.subr.mxu0 0.0
    %578 = vmatpush1.msra.mxu0 %v535
    %579 = vmatprep.subr.mxu0 0.0
    %580 = vmatpush1.msra.mxu0 %v534
    %581 = vmatprep.subr.mxu0 0.0
    %582 = vmatpush1.msra.mxu0 %v533
    %583 = vmatprep.subr.mxu0 0.0
    %584 = vmatpush1.msra.mxu0 %v532
    %585 = vmatprep.subr.mxu0 0.0
    %586 = vmatpush2.msra.mxu0 0.0
    %587 = vmatprep.subr.mxu0 0.0
    %588 = vmatpush2.msra.mxu0 0.0
    %589 = vmatprep.subr.mxu0 0.0
    %590 = vmatpush2.msra.mxu0 0.0
    %591 = vmatprep.subr.mxu0 0.0
    %592 = vmatpush2.msra.mxu0 0.0
    %593 = vmatprep.subr.mxu0 0.0
    %594 = vmatpush2.msra.mxu0 0.0
    %595 = vmatprep.subr.mxu0 0.0
    %596 = vmatpush2.msra.mxu0 0.0
    %597 = vmatprep.subr.mxu0 0.0
    %598 = vmatpush2.msra.mxu0 0.0
    %599 = vmatprep.subr.mxu0 0.0
    %600 = vmatpush2.msra.mxu0 0.0
    %601 = vmatprep.subr.mxu0 0.0
    %602 = vmatpush2.msra.mxu0 0.0
    %603 = vmatprep.subr.mxu0 0.0
    %604 = vmatpush2.msra.mxu0 0.0
    %605 = vmatprep.subr.mxu0 0.0
    %606 = vmatpush2.msra.mxu0 0.0
    %607 = vmatprep.subr.mxu0 0.0
    %608 = vmatpush2.msra.mxu0 0.0
    %609 = vmatprep.subr.mxu0 0.0
    %610 = vmatpush2.msra.mxu0 0.0
    %611 = vmatprep.subr.mxu0 0.0
    %612 = vmatpush2.msra.mxu0 0.0
    %613 = vmatprep.subr.mxu0 0.0
    %614 = vmatpush2.msra.mxu0 0.0
    %615 = vmatprep.subr.mxu0 0.0
    %616 = vmatpush2.msra.mxu0 0.0
    %617 = vmatprep.mubr.f32.mxu0 0.0
    %618 = vmatmul.mubr.f32.gmra.mxu0 %v530
    %v619 = vpop.f32.mrf.mxu0
    %v620 = vadd.f32 %v552, %v619
    %v621 = vpop.f32.mrf.mxu0
    %622 = vdwg.mxu0
    %v623 = vmax.f32 %v620, 0.0
    %s624 = scalar_lea.vmem [#allocation5], 512
    %v625 = vld [vmem:[%s624] sm:$0xff]
    %v626 = vld [vmem:[%s624 + $0x8] sm:$0xff]
    %v627 = vld [vmem:[%s624 + $0x10] sm:$0xff]
    %v628 = vld [vmem:[%s624 + $0x18] sm:$0xff]
    %v629 = vld [vmem:[%s624 + $0x20] sm:$0xff]
    %v630 = vld [vmem:[%s624 + $0x28] sm:$0xff]
    %v631 = vld [vmem:[%s624 + $0x30] sm:$0xff]
    %v632 = vld [vmem:[%s624 + $0x38] sm:$0xff]
    %v633 = vld [vmem:[%s624 + $0x40] sm:$0xff]
    %v634 = vld [vmem:[%s624 + $0x48] sm:$0xff]
    %v635 = vld [vmem:[%s624 + $0x50] sm:$0xff]
    %v636 = vld [vmem:[%s624 + $0x58] sm:$0xff]
    %v637 = vld [vmem:[%s624 + $0x60] sm:$0xff]
    %v638 = vld [vmem:[%s624 + $0x68] sm:$0xff]
    %v639 = vld [vmem:[%s624 + $0x70] sm:$0xff]
    %v640 = vld [vmem:[%s624 + $0x78] sm:$0xff]
    %v641 = vld [vmem:[#allocation7 + $0x6] sm:$0x1]
    %v642 = vld [vmem:[#allocation7 + $0x7] sm:$0x1]
    %v643 = vsel %vm74, %v623, 0.0
    %v644 = vrot.slane %v643, 4
    %v645 = vadd.f32 %v643, %v644
    %v646 = vrot.slane %v645, 2
    %v647 = vadd.f32 %v645, %v646
    %v648 = vrot.slane %v647, 1
    %v649 = vadd.f32 %v647, %v648
    %650 = vmatprep.subr.mxu0 0.0
    %651 = vmatpush1.msra.mxu0 %v640
    %652 = vmatprep.subr.mxu0 0.0
    %653 = vmatpush1.msra.mxu0 %v639
    %654 = vmatprep.subr.mxu0 0.0
    %655 = vmatpush1.msra.mxu0 %v638
    %656 = vmatprep.subr.mxu0 0.0
    %657 = vmatpush1.msra.mxu0 %v637
    %658 = vmatprep.subr.mxu0 0.0
    %659 = vmatpush1.msra.mxu0 %v636
    %660 = vmatprep.subr.mxu0 0.0
    %661 = vmatpush1.msra.mxu0 %v635
    %662 = vmatprep.subr.mxu0 0.0
    %663 = vmatpush1.msra.mxu0 %v634
    %664 = vmatprep.subr.mxu0 0.0
    %665 = vmatpush1.msra.mxu0 %v633
    %666 = vmatprep.subr.mxu0 0.0
    %667 = vmatpush1.msra.mxu0 %v632
    %668 = vmatprep.subr.mxu0 0.0
    %669 = vmatpush1.msra.mxu0 %v631
    %670 = vmatprep.subr.mxu0 0.0
    %671 = vmatpush1.msra.mxu0 %v630
    %672 = vmatprep.subr.mxu0 0.0
    %673 = vmatpush1.msra.mxu0 %v629
    %674 = vmatprep.subr.mxu0 0.0
    %675 = vmatpush1.msra.mxu0 %v628
    %676 = vmatprep.subr.mxu0 0.0
    %677 = vmatpush1.msra.mxu0 %v627
    %678 = vmatprep.subr.mxu0 0.0
    %679 = vmatpush1.msra.mxu0 %v626
    %680 = vmatprep.subr.mxu0 0.0
    %681 = vmatpush1.msra.mxu0 %v625
    %682 = vmatprep.subr.mxu0 0.0
    %683 = vmatpush2.msra.mxu0 0.0
    %684 = vmatprep.subr.mxu0 0.0
    %685 = vmatpush2.msra.mxu0 0.0
    %686 = vmatprep.subr.mxu0 0.0
    %687 = vmatpush2.msra.mxu0 0.0
    %688 = vmatprep.subr.mxu0 0.0
    %689 = vmatpush2.msra.mxu0 0.0
    %690 = vmatprep.subr.mxu0 0.0
    %691 = vmatpush2.msra.mxu0 0.0
    %692 = vmatprep.subr.mxu0 0.0
    %693 = vmatpush2.msra.mxu0 0.0
    %694 = vmatprep.subr.mxu0 0.0
    %695 = vmatpush2.msra.mxu0 0.0
    %696 = vmatprep.subr.mxu0 0.0
    %697 = vmatpush2.msra.mxu0 0.0
    %698 = vmatprep.subr.mxu0 0.0
    %699 = vmatpush2.msra.mxu0 0.0
    %700 = vmatprep.subr.mxu0 0.0
    %701 = vmatpush2.msra.mxu0 0.0
    %702 = vmatprep.subr.mxu0 0.0
    %703 = vmatpush2.msra.mxu0 0.0
    %704 = vmatprep.subr.mxu0 0.0
    %705 = vmatpush2.msra.mxu0 0.0
    %706 = vmatprep.subr.mxu0 0.0
    %707 = vmatpush2.msra.mxu0 0.0
    %708 = vmatprep.subr.mxu0 0.0
    %709 = vmatpush2.msra.mxu0 0.0
    %710 = vmatprep.subr.mxu0 0.0
    %711 = vmatpush2.msra.mxu0 0.0
    %712 = vmatprep.subr.mxu0 0.0
    %713 = vmatpush2.msra.mxu0 0.0
    %714 = vmatprep.mubr.f32.mxu0 0.0
    %715 = vmatmul.mubr.f32.gmra.mxu0 %v649
    %v716 = vpop.f32.mrf.mxu0
    %v717 = vadd.f32 0.0, %v716
    %v718 = vpop.f32.mrf.mxu0
    %719 = vdwg.mxu0
    %v720 = vmul.f32 %v623, %v623
    %v721 = vsel %vm74, %v720, 0.0
    %v722 = vrot.slane %v721, 4
    %v723 = vadd.f32 %v721, %v722
    %v724 = vrot.slane %v723, 2
    %v725 = vadd.f32 %v723, %v724
    %v726 = vrot.slane %v725, 1
    %v727 = vadd.f32 %v725, %v726
    %728 = vmatprep.subr.mxu0 0.0
    %729 = vmatpush1.msra.mxu0 %v640
    %730 = vmatprep.subr.mxu0 0.0
    %731 = vmatpush1.msra.mxu0 %v639
    %732 = vmatprep.subr.mxu0 0.0
    %733 = vmatpush1.msra.mxu0 %v638
    %734 = vmatprep.subr.mxu0 0.0
    %735 = vmatpush1.msra.mxu0 %v637
    %736 = vmatprep.subr.mxu0 0.0
    %737 = vmatpush1.msra.mxu0 %v636
    %738 = vmatprep.subr.mxu0 0.0
    %739 = vmatpush1.msra.mxu0 %v635
    %740 = vmatprep.subr.mxu0 0.0
    %741 = vmatpush1.msra.mxu0 %v634
    %742 = vmatprep.subr.mxu0 0.0
    %743 = vmatpush1.msra.mxu0 %v633
    %744 = vmatprep.subr.mxu0 0.0
    %745 = vmatpush1.msra.mxu0 %v632
    %746 = vmatprep.subr.mxu0 0.0
    %747 = vmatpush1.msra.mxu0 %v631
    %748 = vmatprep.subr.mxu0 0.0
    %749 = vmatpush1.msra.mxu0 %v630
    %750 = vmatprep.subr.mxu0 0.0
    %751 = vmatpush1.msra.mxu0 %v629
    %752 = vmatprep.subr.mxu0 0.0
    %753 = vmatpush1.msra.mxu0 %v628
    %754 = vmatprep.subr.mxu0 0.0
    %755 = vmatpush1.msra.mxu0 %v627
    %756 = vmatprep.subr.mxu0 0.0
    %757 = vmatpush1.msra.mxu0 %v626
    %758 = vmatprep.subr.mxu0 0.0
    %759 = vmatpush1.msra.mxu0 %v625
    %760 = vmatprep.subr.mxu0 0.0
    %761 = vmatpush2.msra.mxu0 0.0
    %762 = vmatprep.subr.mxu0 0.0
    %763 = vmatpush2.msra.mxu0 0.0
    %764 = vmatprep.subr.mxu0 0.0
    %765 = vmatpush2.msra.mxu0 0.0
    %766 = vmatprep.subr.mxu0 0.0
    %767 = vmatpush2.msra.mxu0 0.0
    %768 = vmatprep.subr.mxu0 0.0
    %769 = vmatpush2.msra.mxu0 0.0
    %770 = vmatprep.subr.mxu0 0.0
    %771 = vmatpush2.msra.mxu0 0.0
    %772 = vmatprep.subr.mxu0 0.0
    %773 = vmatpush2.msra.mxu0 0.0
    %774 = vmatprep.subr.mxu0 0.0
    %775 = vmatpush2.msra.mxu0 0.0
    %776 = vmatprep.subr.mxu0 0.0
    %777 = vmatpush2.msra.mxu0 0.0
    %778 = vmatprep.subr.mxu0 0.0
    %779 = vmatpush2.msra.mxu0 0.0
    %780 = vmatprep.subr.mxu0 0.0
    %781 = vmatpush2.msra.mxu0 0.0
    %782 = vmatprep.subr.mxu0 0.0
    %783 = vmatpush2.msra.mxu0 0.0
    %784 = vmatprep.subr.mxu0 0.0
    %785 = vmatpush2.msra.mxu0 0.0
    %786 = vmatprep.subr.mxu0 0.0
    %787 = vmatpush2.msra.mxu0 0.0
    %788 = vmatprep.subr.mxu0 0.0
    %789 = vmatpush2.msra.mxu0 0.0
    %790 = vmatprep.subr.mxu0 0.0
    %791 = vmatpush2.msra.mxu0 0.0
    %792 = vmatprep.mubr.f32.mxu0 0.0
    %793 = vmatmul.mubr.f32.gmra.mxu0 %v727
    %v794 = vpop.f32.mrf.mxu0
    %v795 = vadd.f32 0.0, %v794
    %v796 = vpop.f32.mrf.mxu0
    %797 = vdwg.mxu0
    %v798 = vmul.f32 %v717, %v717
    %v799 = vsub.f32 %v795, %v798
    %v800 = vadd.f32 %v799, 1e-05
    %v801 = vrsqrt.pop %v800
    %v802 = vmul.f32 %v641, %v801
    %v803 = vlaneseq
    %v804 = vshrl.u32 %v803, 7
    %v805 = vsub.s32 0, %v804
    %v806 = vrot.slane %v802, %v805
    %v807 = vmul.f32 %v623, %v806
    %v808 = vmul.f32 %v717, %v802
    %v809 = vsub.f32 %v642, %v808
    %v810 = vlaneseq
    %v811 = vshrl.u32 %v810, 7
    %v812 = vsub.s32 0, %v811
    %v813 = vrot.slane %v809, %v812
    %v814 = vadd.f32 %v807, %v813
    %s815 = scalar_lea.vmem [#allocation5], 640
    %v816 = vld [vmem:[%s815] sm:$0xff]
    %v817 = vld [vmem:[%s815 + $0x8] sm:$0xff]
    %v818 = vld [vmem:[%s815 + $0x10] sm:$0xff]
    %v819 = vld [vmem:[%s815 + $0x18] sm:$0xff]
    %v820 = vld [vmem:[%s815 + $0x20] sm:$0xff]
    %v821 = vld [vmem:[%s815 + $0x28] sm:$0xff]
    %v822 = vld [vmem:[%s815 + $0x30] sm:$0xff]
    %v823 = vld [vmem:[%s815 + $0x38] sm:$0xff]
    %v824 = vld [vmem:[%s815 + $0x40] sm:$0xff]
    %v825 = vld [vmem:[%s815 + $0x48] sm:$0xff]
    %v826 = vld [vmem:[%s815 + $0x50] sm:$0xff]
    %v827 = vld [vmem:[%s815 + $0x58] sm:$0xff]
    %v828 = vld [vmem:[%s815 + $0x60] sm:$0xff]
    %v829 = vld [vmem:[%s815 + $0x68] sm:$0xff]
    %v830 = vld [vmem:[%s815 + $0x70] sm:$0xff]
    %v831 = vld [vmem:[%s815 + $0x78] sm:$0xff]
    %v832 = vld [vmem:[#allocation7 + $0x8] sm:$0x1]
    %v833 = vlaneseq
    %v834 = vshrl.u32 %v833, 7
    %v835 = vsub.s32 0, %v834
    %v836 = vrot.slane %v832, %v835
    %837 = vmatprep.subr.mxu0 0.0
    %838 = vmatpush1.msra.mxu0 %v831
    %839 = vmatprep.subr.mxu0 0.0
    %840 = vmatpush1.msra.mxu0 %v830
    %841 = vmatprep.subr.mxu0 0.0
    %842 = vmatpush1.msra.mxu0 %v829
    %843 = vmatprep.subr.mxu0 0.0
    %844 = vmatpush1.msra.mxu0 %v828
    %845 = vmatprep.subr.mxu0 0.0
    %846 = vmatpush1.msra.mxu0 %v827
    %847 = vmatprep.subr.mxu0 0.0
    %848 = vmatpush1.msra.mxu0 %v826
    %849 = vmatprep.subr.mxu0 0.0
    %850 = vmatpush1.msra.mxu0 %v825
    %851 = vmatprep.subr.mxu0 0.0
    %852 = vmatpush1.msra.mxu0 %v824
    %853 = vmatprep.subr.mxu0 0.0
    %854 = vmatpush1.msra.mxu0 %v823
    %855 = vmatprep.subr.mxu0 0.0
    %856 = vmatpush1.msra.mxu0 %v822
    %857 = vmatprep.subr.mxu0 0.0
    %858 = vmatpush1.msra.mxu0 %v821
    %859 = vmatprep.subr.mxu0 0.0
    %860 = vmatpush1.msra.mxu0 %v820
    %861 = vmatprep.subr.mxu0 0.0
    %862 = vmatpush1.msra.mxu0 %v819
    %863 = vmatprep.subr.mxu0 0.0
    %864 = vmatpush1.msra.mxu0 %v818
    %865 = vmatprep.subr.mxu0 0.0
    %866 = vmatpush1.msra.mxu0 %v817
    %867 = vmatprep.subr.mxu0 0.0
    %868 = vmatpush1.msra.mxu0 %v816
    %869 = vmatprep.subr.mxu0 0.0
    %870 = vmatpush2.msra.mxu0 0.0
    %871 = vmatprep.subr.mxu0 0.0
    %872 = vmatpush2.msra.mxu0 0.0
    %873 = vmatprep.subr.mxu0 0.0
    %874 = vmatpush2.msra.mxu0 0.0
    %875 = vmatprep.subr.mxu0 0.0
    %876 = vmatpush2.msra.mxu0 0.0
    %877 = vmatprep.subr.mxu0 0.0
    %878 = vmatpush2.msra.mxu0 0.0
    %879 = vmatprep.subr.mxu0 0.0
    %880 = vmatpush2.msra.mxu0 0.0
    %881 = vmatprep.subr.mxu0 0.0
    %882 = vmatpush2.msra.mxu0 0.0
    %883 = vmatprep.subr.mxu0 0.0
    %884 = vmatpush2.msra.mxu0 0.0
    %885 = vmatprep.subr.mxu0 0.0
    %886 = vmatpush2.msra.mxu0 0.0
    %887 = vmatprep.subr.mxu0 0.0
    %888 = vmatpush2.msra.mxu0 0.0
    %889 = vmatprep.subr.mxu0 0.0
    %890 = vmatpush2.msra.mxu0 0.0
    %891 = vmatprep.subr.mxu0 0.0
    %892 = vmatpush2.msra.mxu0 0.0
    %893 = vmatprep.subr.mxu0 0.0
    %894 = vmatpush2.msra.mxu0 0.0
    %895 = vmatprep.subr.mxu0 0.0
    %896 = vmatpush2.msra.mxu0 0.0
    %897 = vmatprep.subr.mxu0 0.0
    %898 = vmatpush2.msra.mxu0 0.0
    %899 = vmatprep.subr.mxu0 0.0
    %900 = vmatpush2.msra.mxu0 0.0
    %901 = vmatprep.mubr.f32.mxu0 0.0
    %902 = vmatmul.mubr.f32.gmra.mxu0 %v814
    %v903 = vpop.f32.mrf.mxu0
    %v904 = vadd.f32 %v836, %v903
    %v905 = vpop.f32.mrf.mxu0
    %906 = vdwg.mxu0
    %v907 = vmax.f32 %v904, 0.0
    %s908 = scalar_lea.vmem [#allocation5], 768
    %v909 = vld [vmem:[%s908] sm:$0xff]
    %v910 = vld [vmem:[%s908 + $0x8] sm:$0xff]
    %v911 = vld [vmem:[%s908 + $0x10] sm:$0xff]
    %v912 = vld [vmem:[%s908 + $0x18] sm:$0xff]
    %v913 = vld [vmem:[%s908 + $0x20] sm:$0xff]
    %v914 = vld [vmem:[%s908 + $0x28] sm:$0xff]
    %v915 = vld [vmem:[%s908 + $0x30] sm:$0xff]
    %v916 = vld [vmem:[%s908 + $0x38] sm:$0xff]
    %v917 = vld [vmem:[%s908 + $0x40] sm:$0xff]
    %v918 = vld [vmem:[%s908 + $0x48] sm:$0xff]
    %v919 = vld [vmem:[%s908 + $0x50] sm:$0xff]
    %v920 = vld [vmem:[%s908 + $0x58] sm:$0xff]
    %v921 = vld [vmem:[%s908 + $0x60] sm:$0xff]
    %v922 = vld [vmem:[%s908 + $0x68] sm:$0xff]
    %v923 = vld [vmem:[%s908 + $0x70] sm:$0xff]
    %v924 = vld [vmem:[%s908 + $0x78] sm:$0xff]
    %v925 = vld [vmem:[#allocation7 + $0x9] sm:$0x1]
    %v926 = vld [vmem:[#allocation7 + $0xa] sm:$0x1]
    %v927 = vsel %vm74, %v907, 0.0
    %v928 = vrot.slane %v927, 4
    %v929 = vadd.f32 %v927, %v928
    %v930 = vrot.slane %v929, 2
    %v931 = vadd.f32 %v929, %v930
    %v932 = vrot.slane %v931, 1
    %v933 = vadd.f32 %v931, %v932
    %934 = vmatprep.subr.mxu0 0.0
    %935 = vmatpush1.msra.mxu0 %v924
    %936 = vmatprep.subr.mxu0 0.0
    %937 = vmatpush1.msra.mxu0 %v923
    %938 = vmatprep.subr.mxu0 0.0
    %939 = vmatpush1.msra.mxu0 %v922
    %940 = vmatprep.subr.mxu0 0.0
    %941 = vmatpush1.msra.mxu0 %v921
    %942 = vmatprep.subr.mxu0 0.0
    %943 = vmatpush1.msra.mxu0 %v920
    %944 = vmatprep.subr.mxu0 0.0
    %945 = vmatpush1.msra.mxu0 %v919
    %946 = vmatprep.subr.mxu0 0.0
    %947 = vmatpush1.msra.mxu0 %v918
    %948 = vmatprep.subr.mxu0 0.0
    %949 = vmatpush1.msra.mxu0 %v917
    %950 = vmatprep.subr.mxu0 0.0
    %951 = vmatpush1.msra.mxu0 %v916
    %952 = vmatprep.subr.mxu0 0.0
    %953 = vmatpush1.msra.mxu0 %v915
    %954 = vmatprep.subr.mxu0 0.0
    %955 = vmatpush1.msra.mxu0 %v914
    %956 = vmatprep.subr.mxu0 0.0
    %957 = vmatpush1.msra.mxu0 %v913
    %958 = vmatprep.subr.mxu0 0.0
    %959 = vmatpush1.msra.mxu0 %v912
    %960 = vmatprep.subr.mxu0 0.0
    %961 = vmatpush1.msra.mxu0 %v911
    %962 = vmatprep.subr.mxu0 0.0
    %963 = vmatpush1.msra.mxu0 %v910
    %964 = vmatprep.subr.mxu0 0.0
    %965 = vmatpush1.msra.mxu0 %v909
    %966 = vmatprep.subr.mxu0 0.0
    %967 = vmatpush2.msra.mxu0 0.0
    %968 = vmatprep.subr.mxu0 0.0
    %969 = vmatpush2.msra.mxu0 0.0
    %970 = vmatprep.subr.mxu0 0.0
    %971 = vmatpush2.msra.mxu0 0.0
    %972 = vmatprep.subr.mxu0 0.0
    %973 = vmatpush2.msra.mxu0 0.0
    %974 = vmatprep.subr.mxu0 0.0
    %975 = vmatpush2.msra.mxu0 0.0
    %976 = vmatprep.subr.mxu0 0.0
    %977 = vmatpush2.msra.mxu0 0.0
    %978 = vmatprep.subr.mxu0 0.0
    %979 = vmatpush2.msra.mxu0 0.0
    %980 = vmatprep.subr.mxu0 0.0
    %981 = vmatpush2.msra.mxu0 0.0
    %982 = vmatprep.subr.mxu0 0.0
    %983 = vmatpush2.msra.mxu0 0.0
    %984 = vmatprep.subr.mxu0 0.0
    %985 = vmatpush2.msra.mxu0 0.0
    %986 = vmatprep.subr.mxu0 0.0
    %987 = vmatpush2.msra.mxu0 0.0
    %988 = vmatprep.subr.mxu0 0.0
    %989 = vmatpush2.msra.mxu0 0.0
    %990 = vmatprep.subr.mxu0 0.0
    %991 = vmatpush2.msra.mxu0 0.0
    %992 = vmatprep.subr.mxu0 0.0
    %993 = vmatpush2.msra.mxu0 0.0
    %994 = vmatprep.subr.mxu0 0.0
    %995 = vmatpush2.msra.mxu0 0.0
    %996 = vmatprep.subr.mxu0 0.0
    %997 = vmatpush2.msra.mxu0 0.0
    %998 = vmatprep.mubr.f32.mxu0 0.0
    %999 = vmatmul.mubr.f32.gmra.mxu0 %v933
    %v1000 = vpop.f32.mrf.mxu0
    %v1001 = vadd.f32 0.0, %v1000
    %v1002 = vpop.f32.mrf.mxu0
    %1003 = vdwg.mxu0
    %v1004 = vmul.f32 %v907, %v907
    %v1005 = vsel %vm74, %v1004, 0.0
    %v1006 = vrot.slane %v1005, 4
    %v1007 = vadd.f32 %v1005, %v1006
    %v1008 = vrot.slane %v1007, 2
    %v1009 = vadd.f32 %v1007, %v1008
    %v1010 = vrot.slane %v1009, 1
    %v1011 = vadd.f32 %v1009, %v1010
    %1012 = vmatprep.subr.mxu0 0.0
    %1013 = vmatpush1.msra.mxu0 %v924
    %1014 = vmatprep.subr.mxu0 0.0
    %1015 = vmatpush1.msra.mxu0 %v923
    %1016 = vmatprep.subr.mxu0 0.0
    %1017 = vmatpush1.msra.mxu0 %v922
    %1018 = vmatprep.subr.mxu0 0.0
    %1019 = vmatpush1.msra.mxu0 %v921
    %1020 = vmatprep.subr.mxu0 0.0
    %1021 = vmatpush1.msra.mxu0 %v920
    %1022 = vmatprep.subr.mxu0 0.0
    %1023 = vmatpush1.msra.mxu0 %v919
    %1024 = vmatprep.subr.mxu0 0.0
    %1025 = vmatpush1.msra.mxu0 %v918
    %1026 = vmatprep.subr.mxu0 0.0
    %1027 = vmatpush1.msra.mxu0 %v917
    %1028 = vmatprep.subr.mxu0 0.0
    %1029 = vmatpush1.msra.mxu0 %v916
    %1030 = vmatprep.subr.mxu0 0.0
    %1031 = vmatpush1.msra.mxu0 %v915
    %1032 = vmatprep.subr.mxu0 0.0
    %1033 = vmatpush1.msra.mxu0 %v914
    %1034 = vmatprep.subr.mxu0 0.0
    %1035 = vmatpush1.msra.mxu0 %v913
    %1036 = vmatprep.subr.mxu0 0.0
    %1037 = vmatpush1.msra.mxu0 %v912
    %1038 = vmatprep.subr.mxu0 0.0
    %1039 = vmatpush1.msra.mxu0 %v911
    %1040 = vmatprep.subr.mxu0 0.0
    %1041 = vmatpush1.msra.mxu0 %v910
    %1042 = vmatprep.subr.mxu0 0.0
    %1043 = vmatpush1.msra.mxu0 %v909
    %1044 = vmatprep.subr.mxu0 0.0
    %1045 = vmatpush2.msra.mxu0 0.0
    %1046 = vmatprep.subr.mxu0 0.0
    %1047 = vmatpush2.msra.mxu0 0.0
    %1048 = vmatprep.subr.mxu0 0.0
    %1049 = vmatpush2.msra.mxu0 0.0
    %1050 = vmatprep.subr.mxu0 0.0
    %1051 = vmatpush2.msra.mxu0 0.0
    %1052 = vmatprep.subr.mxu0 0.0
    %1053 = vmatpush2.msra.mxu0 0.0
    %1054 = vmatprep.subr.mxu0 0.0
    %1055 = vmatpush2.msra.mxu0 0.0
    %1056 = vmatprep.subr.mxu0 0.0
    %1057 = vmatpush2.msra.mxu0 0.0
    %1058 = vmatprep.subr.mxu0 0.0
    %1059 = vmatpush2.msra.mxu0 0.0
    %1060 = vmatprep.subr.mxu0 0.0
    %1061 = vmatpush2.msra.mxu0 0.0
    %1062 = vmatprep.subr.mxu0 0.0
    %1063 = vmatpush2.msra.mxu0 0.0
    %1064 = vmatprep.subr.mxu0 0.0
    %1065 = vmatpush2.msra.mxu0 0.0
    %1066 = vmatprep.subr.mxu0 0.0
    %1067 = vmatpush2.msra.mxu0 0.0
    %1068 = vmatprep.subr.mxu0 0.0
    %1069 = vmatpush2.msra.mxu0 0.0
    %1070 = vmatprep.subr.mxu0 0.0
    %1071 = vmatpush2.msra.mxu0 0.0
    %1072 = vmatprep.subr.mxu0 0.0
    %1073 = vmatpush2.msra.mxu0 0.0
    %1074 = vmatprep.subr.mxu0 0.0
    %1075 = vmatpush2.msra.mxu0 0.0
    %1076 = vmatprep.mubr.f32.mxu0 0.0
    %1077 = vmatmul.mubr.f32.gmra.mxu0 %v1011
    %v1078 = vpop.f32.mrf.mxu0
    %v1079 = vadd.f32 0.0, %v1078
    %v1080 = vpop.f32.mrf.mxu0
    %1081 = vdwg.mxu0
    %v1082 = vmul.f32 %v1001, %v1001
    %v1083 = vsub.f32 %v1079, %v1082
    %v1084 = vadd.f32 %v1083, 1e-05
    %v1085 = vrsqrt.pop %v1084
    %v1086 = vmul.f32 %v925, %v1085
    %v1087 = vlaneseq
    %v1088 = vshrl.u32 %v1087, 7
    %v1089 = vsub.s32 0, %v1088
    %v1090 = vrot.slane %v1086, %v1089
    %v1091 = vmul.f32 %v907, %v1090
    %v1092 = vmul.f32 %v1001, %v1086
    %v1093 = vsub.f32 %v926, %v1092
    %v1094 = vlaneseq
    %v1095 = vshrl.u32 %v1094, 7
    %v1096 = vsub.s32 0, %v1095
    %v1097 = vrot.slane %v1093, %v1096
    %v1098 = vadd.f32 %v1091, %v1097
    %s1099 = scalar_lea.vmem [#allocation5], 896
    %v1100 = vld [vmem:[%s1099] sm:$0xff]
    %v1101 = vld [vmem:[%s1099 + $0x8] sm:$0xff]
    %v1102 = vld [vmem:[%s1099 + $0x10] sm:$0xff]
    %v1103 = vld [vmem:[%s1099 + $0x18] sm:$0xff]
    %v1104 = vld [vmem:[%s1099 + $0x20] sm:$0xff]
    %v1105 = vld [vmem:[%s1099 + $0x28] sm:$0xff]
    %v1106 = vld [vmem:[%s1099 + $0x30] sm:$0xff]
    %v1107 = vld [vmem:[%s1099 + $0x38] sm:$0xff]
    %v1108 = vld [vmem:[%s1099 + $0x40] sm:$0xff]
    %v1109 = vld [vmem:[%s1099 + $0x48] sm:$0xff]
    %v1110 = vld [vmem:[%s1099 + $0x50] sm:$0xff]
    %v1111 = vld [vmem:[%s1099 + $0x58] sm:$0xff]
    %v1112 = vld [vmem:[%s1099 + $0x60] sm:$0xff]
    %v1113 = vld [vmem:[%s1099 + $0x68] sm:$0xff]
    %v1114 = vld [vmem:[%s1099 + $0x70] sm:$0xff]
    %v1115 = vld [vmem:[%s1099 + $0x78] sm:$0xff]
    %v1116 = vld [vmem:[#allocation7 + $0xb] sm:$0x1]
    %v1117 = vlaneseq
    %v1118 = vshrl.u32 %v1117, 7
    %v1119 = vsub.s32 0, %v1118
    %v1120 = vrot.slane %v1116, %v1119
    %1121 = vmatprep.subr.mxu0 0.0
    %1122 = vmatpush1.msra.mxu0 %v1115
    %1123 = vmatprep.subr.mxu0 0.0
    %1124 = vmatpush1.msra.mxu0 %v1114
    %1125 = vmatprep.subr.mxu0 0.0
    %1126 = vmatpush1.msra.mxu0 %v1113
    %1127 = vmatprep.subr.mxu0 0.0
    %1128 = vmatpush1.msra.mxu0 %v1112
    %1129 = vmatprep.subr.mxu0 0.0
    %1130 = vmatpush1.msra.mxu0 %v1111
    %1131 = vmatprep.subr.mxu0 0.0
    %1132 = vmatpush1.msra.mxu0 %v1110
    %1133 = vmatprep.subr.mxu0 0.0
    %1134 = vmatpush1.msra.mxu0 %v1109
    %1135 = vmatprep.subr.mxu0 0.0
    %1136 = vmatpush1.msra.mxu0 %v1108
    %1137 = vmatprep.subr.mxu0 0.0
    %1138 = vmatpush1.msra.mxu0 %v1107
    %1139 = vmatprep.subr.mxu0 0.0
    %1140 = vmatpush1.msra.mxu0 %v1106
    %1141 = vmatprep.subr.mxu0 0.0
    %1142 = vmatpush1.msra.mxu0 %v1105
    %1143 = vmatprep.subr.mxu0 0.0
    %1144 = vmatpush1.msra.mxu0 %v1104
    %1145 = vmatprep.subr.mxu0 0.0
    %1146 = vmatpush1.msra.mxu0 %v1103
    %1147 = vmatprep.subr.mxu0 0.0
    %1148 = vmatpush1.msra.mxu0 %v1102
    %1149 = vmatprep.subr.mxu0 0.0
    %1150 = vmatpush1.msra.mxu0 %v1101
    %1151 = vmatprep.subr.mxu0 0.0
    %1152 = vmatpush1.msra.mxu0 %v1100
    %1153 = vmatprep.subr.mxu0 0.0
    %1154 = vmatpush2.msra.mxu0 0.0
    %1155 = vmatprep.subr.mxu0 0.0
    %1156 = vmatpush2.msra.mxu0 0.0
    %1157 = vmatprep.subr.mxu0 0.0
    %1158 = vmatpush2.msra.mxu0 0.0
    %1159 = vmatprep.subr.mxu0 0.0
    %1160 = vmatpush2.msra.mxu0 0.0
    %1161 = vmatprep.subr.mxu0 0.0
    %1162 = vmatpush2.msra.mxu0 0.0
    %1163 = vmatprep.subr.mxu0 0.0
    %1164 = vmatpush2.msra.mxu0 0.0
    %1165 = vmatprep.subr.mxu0 0.0
    %1166 = vmatpush2.msra.mxu0 0.0
    %1167 = vmatprep.subr.mxu0 0.0
    %1168 = vmatpush2.msra.mxu0 0.0
    %1169 = vmatprep.subr.mxu0 0.0
    %1170 = vmatpush2.msra.mxu0 0.0
    %1171 = vmatprep.subr.mxu0 0.0
    %1172 = vmatpush2.msra.mxu0 0.0
    %1173 = vmatprep.subr.mxu0 0.0
    %1174 = vmatpush2.msra.mxu0 0.0
    %1175 = vmatprep.subr.mxu0 0.0
    %1176 = vmatpush2.msra.mxu0 0.0
    %1177 = vmatprep.subr.mxu0 0.0
    %1178 = vmatpush2.msra.mxu0 0.0
    %1179 = vmatprep.subr.mxu0 0.0
    %1180 = vmatpush2.msra.mxu0 0.0
    %1181 = vmatprep.subr.mxu0 0.0
    %1182 = vmatpush2.msra.mxu0 0.0
    %1183 = vmatprep.subr.mxu0 0.0
    %1184 = vmatpush2.msra.mxu0 0.0
    %1185 = vmatprep.mubr.f32.mxu0 0.0
    %1186 = vmatmul.mubr.f32.gmra.mxu0 %v1098
    %v1187 = vpop.f32.mrf.mxu0
    %v1188 = vadd.f32 %v1120, %v1187
    %v1189 = vpop.f32.mrf.mxu0
    %1190 = vdwg.mxu0
    %1191 = vst [vmem:[#allocation8] sm:$0x3] %v1188
    // Predicated region
    $region26: #{tpu_custom_call.1} parent=1 // pred_check
      _
    $region27: #{tpu_custom_call.1} parent=1 // pred_check_branch
      %1193 = sbr.rel (0) target = $region29
    $region28: #{tpu_custom_call.1} parent=1 // pred_region
      %s1195 = ssub.s32 32, 32
      %1196 = vsyncadd [#allocation4], %s1195
      %s1198 = sshll.u32 [#allocation8], 4
      %s1199 = int_to_ptr.vmem [resolvable:$true] %s1198
      %1201 = dma.vmem_to_hbm [thread:$0]  %s1199, 32, %s3, [#allocation4]
    $region29: #{tpu_custom_call.1} parent=1 // pred_fallthru
      _
    // Predicated region
    $region30: #{tpu_custom_call.1} parent=1 // pred_check
      _
    $region31: #{tpu_custom_call.1} parent=1 // pred_check_branch
      %1203 = sbr.rel (0) target = $region33
    $region32: #{tpu_custom_call.1} parent=1 // pred_region
      %1204 = dma.done [#allocation4], 32
    $region33: #{tpu_custom_call.1} parent=1 // pred_fallthru
      _
    %1205 = vsyncpa [#allocation3], 1
    %1206 = vsyncpa [#allocation6], 1
    %1207 = vsyncpa [#allocation4], 1

</llo_original>
